<compile_context>
chip_gen: v5e
topology: v5e:2x2
jax: 0.10.0
libtpu: 0.0.40
codegen_flags: <defaults>
</compile_context>

<pallas_src>
import functools

import jax
import jax.numpy as jnp
from jax import lax
from jax.experimental import pallas as pl
from jax.experimental.pallas import tpu as pltpu

_LANE = 128
_SQRT_2_OVER_PI = 0.7978845608028654
_INV_SQRT2 = 0.7071067811865476


def _gelu_tanh(x):
    # nn.GELU(approximate='tanh'): jnp.tanh lands on the EUP slot (idle in this
    # kernel) leaving only a few cheap VALU ops, vs the ~25-op erf polynomial.
    return 0.5 * x * (1.0 + jnp.tanh(_SQRT_2_OVER_PI * (x + 0.044715 * x * x * x)))


def _gelu_exact(x):
    # PyTorch nn.GELU() default (erf).  VALU-heavy; select with gelu="exact".
    return 0.5 * x * (1.0 + lax.erf(x * _INV_SQRT2))


def refinement_kernel(scalars_ref, pred_ref, img_ref, out_ref, *,
                      c_in, c_hidden, c_out, gelu):
    """One (batch, pixel-tile) grid step.

    img_ref: (c_in, TS, 128)   pred_ref / out_ref: (c_out, TS, 128)
    scalars_ref: flat f32 SMEM vector (scalar-prefetched once):
      [alpha | w1(c_in,c_hidden) | b1(c_hidden) | beta*w2(c_hidden,c_out) | beta*b2(c_out)]
    """
    o_w1 = 1
    o_b1 = o_w1 + c_in * c_hidden
    o_w2 = o_b1 + c_hidden
    o_b2 = o_w2 + c_hidden * c_out

    act = _gelu_tanh if gelu == "tanh" else _gelu_exact

    # Per-input-channel lane-dense pixel slabs (fully packed f32 vregs).
    x = [img_ref[k] for k in range(c_in)]                       # c_in x (TS, 128)

    # Output-channel accumulators, initialized with the (beta-scaled) bias.
    accs = [jnp.full(x[0].shape, scalars_ref[o_b2 + o], dtype=jnp.float32)
            for o in range(c_out)]

    # Hidden channels: broadcast-FMA (VPU), GELU (EUP), fused 16->2 projection.
    # TODO(synk): on v6e/v7x a bf16 hidden path (f32 accumulators) would ~2x
    # VALU throughput if ~1e-2 tolerance were acceptable; kept f32 for accuracy.
    for c in range(c_hidden):
        h = x[0] * scalars_ref[o_w1 + c]
        for k in range(1, c_in):
            h = h + x[k] * scalars_ref[o_w1 + k * c_hidden + c]
        h = act(h + scalars_ref[o_b1 + c])
        for o in range(c_out):
            accs[o] = accs[o] + scalars_ref[o_w2 + c * c_out + o] * h

    alpha = scalars_ref[0]
    for o in range(c_out):
        out_ref[o] = (alpha * pred_ref[o] + accs[o]).astype(out_ref.dtype)


def _pick_tile_rows(S, target_rows, min_tiles):
    """Pixel-tile size in sublane rows.

    Prefers the largest multiple-of-8 divisor of S that is <= target_rows
    (full tiles -> unmasked full-lane stores, full-size DMAs) and yields at
    least `min_tiles` grid steps (keeps both v7x TensorCores busy when the
    batch axis alone cannot).  Falls back to a plain multiple-of-8 tile with a
    masked (Pallas-handled) final tile when no such divisor exists.
    """
    if S <= 8:
        return S                                 # full extent is always legal
    if min_tiles <= 1 and S <= max(8, target_rows):
        return S
    cap = min(S, max(8, target_rows))
    t = (cap // 8) * 8
    while t >= 8:
        if S % t == 0 and (S // t) >= min_tiles:
            return t
        t -= 8
    t = max(8, (cap // 8) * 8)
    while min_tiles > 1 and pl.cdiv(S, t) < min_tiles and t > 8:
        t -= 8
    return t


@functools.partial(jax.jit, static_argnames=("pixels_per_tile", "gelu"))
def refinement_forward(pred_mask, original_image, params, *,
                       pixels_per_tile=65536, gelu="tanh"):
    """pred_mask: (B,2,H,W) f32; original_image: (B,3,H,W) f32 -> (B,2,H,W)."""
    B, c_out, H, W = pred_mask.shape
    _, c_in, _, _ = original_image.shape
    c_hidden = params["w1"].shape[1]
    P = H * W

    # Channel-major lane-dense layout: (B, C, H, W) -> (B, C, S, 128).
    if P % _LANE == 0:
        S = P // _LANE
        P_pad = P
        img = original_image.reshape(B, c_in, S, _LANE)          # free reshape
        pred = pred_mask.reshape(B, c_out, S, _LANE)
    else:
        # TODO(synk): handle the spatial tail in-kernel (masked last tile /
        # BoundedSlice) to avoid this extra HBM pass for non-aligned sizes.
        S = pl.cdiv(P, _LANE)
        P_pad = S * _LANE
        pad = ((0, 0), (0, 0), (0, P_pad - P))
        img = jnp.pad(original_image.reshape(B, c_in, P), pad).reshape(B, c_in, S, _LANE)
        pred = jnp.pad(pred_mask.reshape(B, c_out, P), pad).reshape(B, c_out, S, _LANE)

    # Big pixel tiles (amortize per-step overhead); >=2 grid steps when B==1.
    target_rows = max(1, pixels_per_tile // _LANE)
    min_tiles = 2 if B == 1 else 1
    ts = _pick_tile_rows(S, target_rows, min_tiles)
    grid = (B, pl.cdiv(S, ts))

    # Fold beta into the second projection; flatten everything into one small
    # f32 vector that is scalar-prefetched into SMEM once before the grid.
    beta = params["beta"].astype(jnp.float32)
    scalars = jnp.concatenate([
        jnp.reshape(params["alpha"], (1,)).astype(jnp.float32),
        params["w1"].astype(jnp.float32).reshape(-1),             # c_in*c_hidden
        params["b1"].astype(jnp.float32).reshape(-1),             # c_hidden
        (params["w2"].astype(jnp.float32) * beta).reshape(-1),    # c_hidden*c_out
        (params["b2"].astype(jnp.float32) * beta).reshape(-1),    # c_out
    ])

    # Double-buffered per-step VMEM footprint; raise the scoped-VMEM limit only
    # when a caller pushes tiles past the v5e 16 MiB scoped default.
    vmem_est = 2 * (c_in + 2 * c_out) * ts * _LANE * 4
    vmem_limit = None
    if vmem_est > 12 * 1024 * 1024:
        vmem_limit = min(int(vmem_est * 1.5) + (2 << 20), 48 * 1024 * 1024)

    kernel = functools.partial(refinement_kernel, c_in=c_in,
                               c_hidden=c_hidden, c_out=c_out, gelu=gelu)

    out = pl.pallas_call(
        kernel,
        out_shape=jax.ShapeDtypeStruct((B, c_out, S, _LANE), jnp.float32),
        grid_spec=pltpu.PrefetchScalarGridSpec(
            num_scalar_prefetch=1,                     # weights -> SMEM once
            grid=grid,
            in_specs=[
                pl.BlockSpec((None, c_out, ts, _LANE),            # pred tile
                             lambda b, t, sc: (b, 0, t, 0)),
                pl.BlockSpec((None, c_in, ts, _LANE),             # img tile
                             lambda b, t, sc: (b, 0, t, 0)),
            ],
            out_specs=pl.BlockSpec((None, c_out, ts, _LANE),
                                   lambda b, t, sc: (b, 0, t, 0)),
        ),
        compiler_params=pltpu.CompilerParams(
            dimension_semantics=("parallel", "parallel"),
            vmem_limit_bytes=vmem_limit),
    )(scalars, pred, img)

    out = out.reshape(B, c_out, P_pad)
    if P_pad != P:
        out = out[:, :, :P]
    return out.reshape(B, c_out, H, W)


def init_params(key):
    """Deterministic init matching nn.Conv2d(3,16,1) / nn.Conv2d(16,2,1)."""
    k1, k2, k3, k4 = jax.random.split(key, 4)
    # Conv weights stored as (Cin, Cout) for the per-pixel channel mix.
    w1 = jax.random.normal(k1, (3, 16), jnp.float32) * 0.1
    b1 = jax.random.normal(k2, (16,), jnp.float32) * 0.1
    w2 = jax.random.normal(k3, (16, 2), jnp.float32) * 0.1
    b2 = jax.random.normal(k4, (2,), jnp.float32) * 0.1
    return dict(w1=w1, b1=b1, w2=w2, b2=b2,
                alpha=jnp.float32(0.5), beta=jnp.float32(0.5))


def reference_forward(pred_mask, original_image, params):
    """Pure-JAX reference mirroring the PyTorch module (exact erf GELU)."""
    B, _, H, W = original_image.shape
    x = jnp.transpose(original_image, (0, 2, 3, 1)).reshape(-1, 3)
    h = _gelu_exact(
        jnp.matmul(x, params["w1"], precision=lax.Precision.HIGHEST) + params["b1"])
    y = jnp.matmul(h, params["w2"], precision=lax.Precision.HIGHEST) + params["b2"]
    y = jnp.transpose(y.reshape(B, H, W, 2), (0, 3, 1, 2))
    return params["alpha"] * pred_mask + params["beta"] * y


if __name__ == "__main__":
    key = jax.random.PRNGKey(0)
    kp, kx, km = jax.random.split(key, 3)

    B, H, W = 2, 16, 16
    params = init_params(kp)
    original_image = jax.random.normal(kx, (B, 3, H, W), jnp.float32)
    pred_mask = jax.random.normal(km, (B, 2, H, W), jnp.float32)

    ref = reference_forward(pred_mask, original_image, params)

    # Exact-GELU path bit-matches the PyTorch module's nn.GELU().
    out_exact = jax.block_until_ready(
        refinement_forward(pred_mask, original_image, params, gelu="exact"))
    assert out_exact.shape == (B, 2, H, W)
    assert jnp.allclose(out_exact, ref, atol=1e-5, rtol=1e-5)

    # Default fast path: tanh GELU on the EUP slot (tiny approximation error).
    out = jax.block_until_ready(
        refinement_forward(pred_mask, original_image, params))
    assert out.shape == (B, 2, H, W)
    assert jnp.allclose(out, ref, atol=2e-3, rtol=0)

    print("KERNEL_OK")
</pallas_src>

<mosaic_0001>
module attributes {stable_mosaic.version = 11 : i64} {
  func.func @refinement_kernel(%arg0: i32, %arg1: i32, %arg2: memref<99xf32, #tpu.memory_space<smem>>, %arg3: memref<1x2x2x128xf32, #tpu.memory_space<vmem>>, %arg4: memref<1x3x2x128xf32, #tpu.memory_space<vmem>>, %arg5: memref<1x2x2x128xf32, #tpu.memory_space<vmem>>) attributes {dimension_semantics = [#tpu.dimension_semantics<parallel>, #tpu.dimension_semantics<parallel>], iteration_bounds = array<i64: 2, 1>, scalar_prefetch = 1 : i64, scratch_operands = 0 : i64, tpu.core_type = #tpu.core_type<tc>, window_params = [{transform_indices = @transform_0, window_bounds = array<i64: 1, 2, 2, 128>}, {transform_indices = @transform_1, window_bounds = array<i64: 1, 3, 2, 128>}, {transform_indices = @transform_2, window_bounds = array<i64: 1, 2, 2, 128>}]} {
    %c0 = arith.constant 0 : index
    %c0_0 = arith.constant 0 : index
    %c0_1 = arith.constant 0 : index
    %c0_2 = arith.constant 0 : index
    %0 = vector.load %arg4[%c0, %c0_0, %c0_1, %c0_2] : memref<1x3x2x128xf32, #tpu.memory_space<vmem>>, vector<1x1x2x128xf32>
    %1 = vector.shape_cast %0 : vector<1x1x2x128xf32> to vector<2x128xf32>
    %c0_3 = arith.constant 0 : index
    %c1 = arith.constant 1 : index
    %c0_4 = arith.constant 0 : index
    %c0_5 = arith.constant 0 : index
    %2 = vector.load %arg4[%c0_3, %c1, %c0_4, %c0_5] : memref<1x3x2x128xf32, #tpu.memory_space<vmem>>, vector<1x1x2x128xf32>
    %3 = vector.shape_cast %2 : vector<1x1x2x128xf32> to vector<2x128xf32>
    %c0_6 = arith.constant 0 : index
    %c2 = arith.constant 2 : index
    %c0_7 = arith.constant 0 : index
    %c0_8 = arith.constant 0 : index
    %4 = vector.load %arg4[%c0_6, %c2, %c0_7, %c0_8] : memref<1x3x2x128xf32, #tpu.memory_space<vmem>>, vector<1x1x2x128xf32>
    %5 = vector.shape_cast %4 : vector<1x1x2x128xf32> to vector<2x128xf32>
    %c97 = arith.constant 97 : index
    %6 = memref.load %arg2[%c97] : memref<99xf32, #tpu.memory_space<smem>>
    %7 = vector.broadcast %6 : f32 to vector<2x128xf32>
    %c98 = arith.constant 98 : index
    %8 = memref.load %arg2[%c98] : memref<99xf32, #tpu.memory_space<smem>>
    %9 = vector.broadcast %8 : f32 to vector<2x128xf32>
    %c1_9 = arith.constant 1 : index
    %10 = memref.load %arg2[%c1_9] : memref<99xf32, #tpu.memory_space<smem>>
    %11 = vector.broadcast %10 : f32 to vector<2x128xf32>
    %12 = arith.mulf %1, %11 : vector<2x128xf32>
    %c17 = arith.constant 17 : index
    %13 = memref.load %arg2[%c17] : memref<99xf32, #tpu.memory_space<smem>>
    %14 = vector.broadcast %13 : f32 to vector<2x128xf32>
    %15 = arith.mulf %3, %14 : vector<2x128xf32>
    %16 = arith.addf %12, %15 : vector<2x128xf32>
    %c33 = arith.constant 33 : index
    %17 = memref.load %arg2[%c33] : memref<99xf32, #tpu.memory_space<smem>>
    %18 = vector.broadcast %17 : f32 to vector<2x128xf32>
    %19 = arith.mulf %5, %18 : vector<2x128xf32>
    %20 = arith.addf %16, %19 : vector<2x128xf32>
    %c49 = arith.constant 49 : index
    %21 = memref.load %arg2[%c49] : memref<99xf32, #tpu.memory_space<smem>>
    %22 = vector.broadcast %21 : f32 to vector<2x128xf32>
    %23 = arith.addf %20, %22 : vector<2x128xf32>
    %cst = arith.constant 5.000000e-01 : f32
    %24 = vector.broadcast %cst : f32 to vector<2x128xf32>
    %25 = arith.mulf %24, %23 : vector<2x128xf32>
    %cst_10 = arith.constant 0.707106769 : f32
    %26 = vector.broadcast %cst_10 : f32 to vector<2x128xf32>
    %27 = arith.mulf %23, %26 : vector<2x128xf32>
    %28 = math.erf %27 : vector<2x128xf32>
    %cst_11 = arith.constant 1.000000e+00 : f32
    %29 = vector.broadcast %cst_11 : f32 to vector<2x128xf32>
    %30 = arith.addf %29, %28 : vector<2x128xf32>
    %31 = arith.mulf %25, %30 : vector<2x128xf32>
    %c65 = arith.constant 65 : index
    %32 = memref.load %arg2[%c65] : memref<99xf32, #tpu.memory_space<smem>>
    %33 = vector.broadcast %32 : f32 to vector<2x128xf32>
    %34 = arith.mulf %33, %31 : vector<2x128xf32>
    %35 = arith.addf %7, %34 : vector<2x128xf32>
    %c66 = arith.constant 66 : index
    %36 = memref.load %arg2[%c66] : memref<99xf32, #tpu.memory_space<smem>>
    %37 = vector.broadcast %36 : f32 to vector<2x128xf32>
    %38 = arith.mulf %37, %31 : vector<2x128xf32>
    %39 = arith.addf %9, %38 : vector<2x128xf32>
    %c2_12 = arith.constant 2 : index
    %40 = memref.load %arg2[%c2_12] : memref<99xf32, #tpu.memory_space<smem>>
    %41 = vector.broadcast %40 : f32 to vector<2x128xf32>
    %42 = arith.mulf %1, %41 : vector<2x128xf32>
    %c18 = arith.constant 18 : index
    %43 = memref.load %arg2[%c18] : memref<99xf32, #tpu.memory_space<smem>>
    %44 = vector.broadcast %43 : f32 to vector<2x128xf32>
    %45 = arith.mulf %3, %44 : vector<2x128xf32>
    %46 = arith.addf %42, %45 : vector<2x128xf32>
    %c34 = arith.constant 34 : index
    %47 = memref.load %arg2[%c34] : memref<99xf32, #tpu.memory_space<smem>>
    %48 = vector.broadcast %47 : f32 to vector<2x128xf32>
    %49 = arith.mulf %5, %48 : vector<2x128xf32>
    %50 = arith.addf %46, %49 : vector<2x128xf32>
    %c50 = arith.constant 50 : index
    %51 = memref.load %arg2[%c50] : memref<99xf32, #tpu.memory_space<smem>>
    %52 = vector.broadcast %51 : f32 to vector<2x128xf32>
    %53 = arith.addf %50, %52 : vector<2x128xf32>
    %cst_13 = arith.constant 5.000000e-01 : f32
    %54 = vector.broadcast %cst_13 : f32 to vector<2x128xf32>
    %55 = arith.mulf %54, %53 : vector<2x128xf32>
    %cst_14 = arith.constant 0.707106769 : f32
    %56 = vector.broadcast %cst_14 : f32 to vector<2x128xf32>
    %57 = arith.mulf %53, %56 : vector<2x128xf32>
    %58 = math.erf %57 : vector<2x128xf32>
    %cst_15 = arith.constant 1.000000e+00 : f32
    %59 = vector.broadcast %cst_15 : f32 to vector<2x128xf32>
    %60 = arith.addf %59, %58 : vector<2x128xf32>
    %61 = arith.mulf %55, %60 : vector<2x128xf32>
    %c67 = arith.constant 67 : index
    %62 = memref.load %arg2[%c67] : memref<99xf32, #tpu.memory_space<smem>>
    %63 = vector.broadcast %62 : f32 to vector<2x128xf32>
    %64 = arith.mulf %63, %61 : vector<2x128xf32>
    %65 = arith.addf %35, %64 : vector<2x128xf32>
    %c68 = arith.constant 68 : index
    %66 = memref.load %arg2[%c68] : memref<99xf32, #tpu.memory_space<smem>>
    %67 = vector.broadcast %66 : f32 to vector<2x128xf32>
    %68 = arith.mulf %67, %61 : vector<2x128xf32>
    %69 = arith.addf %39, %68 : vector<2x128xf32>
    %c3 = arith.constant 3 : index
    %70 = memref.load %arg2[%c3] : memref<99xf32, #tpu.memory_space<smem>>
    %71 = vector.broadcast %70 : f32 to vector<2x128xf32>
    %72 = arith.mulf %1, %71 : vector<2x128xf32>
    %c19 = arith.constant 19 : index
    %73 = memref.load %arg2[%c19] : memref<99xf32, #tpu.memory_space<smem>>
    %74 = vector.broadcast %73 : f32 to vector<2x128xf32>
    %75 = arith.mulf %3, %74 : vector<2x128xf32>
    %76 = arith.addf %72, %75 : vector<2x128xf32>
    %c35 = arith.constant 35 : index
    %77 = memref.load %arg2[%c35] : memref<99xf32, #tpu.memory_space<smem>>
    %78 = vector.broadcast %77 : f32 to vector<2x128xf32>
    %79 = arith.mulf %5, %78 : vector<2x128xf32>
    %80 = arith.addf %76, %79 : vector<2x128xf32>
    %c51 = arith.constant 51 : index
    %81 = memref.load %arg2[%c51] : memref<99xf32, #tpu.memory_space<smem>>
    %82 = vector.broadcast %81 : f32 to vector<2x128xf32>
    %83 = arith.addf %80, %82 : vector<2x128xf32>
    %cst_16 = arith.constant 5.000000e-01 : f32
    %84 = vector.broadcast %cst_16 : f32 to vector<2x128xf32>
    %85 = arith.mulf %84, %83 : vector<2x128xf32>
    %cst_17 = arith.constant 0.707106769 : f32
    %86 = vector.broadcast %cst_17 : f32 to vector<2x128xf32>
    %87 = arith.mulf %83, %86 : vector<2x128xf32>
    %88 = math.erf %87 : vector<2x128xf32>
    %cst_18 = arith.constant 1.000000e+00 : f32
    %89 = vector.broadcast %cst_18 : f32 to vector<2x128xf32>
    %90 = arith.addf %89, %88 : vector<2x128xf32>
    %91 = arith.mulf %85, %90 : vector<2x128xf32>
    %c69 = arith.constant 69 : index
    %92 = memref.load %arg2[%c69] : memref<99xf32, #tpu.memory_space<smem>>
    %93 = vector.broadcast %92 : f32 to vector<2x128xf32>
    %94 = arith.mulf %93, %91 : vector<2x128xf32>
    %95 = arith.addf %65, %94 : vector<2x128xf32>
    %c70 = arith.constant 70 : index
    %96 = memref.load %arg2[%c70] : memref<99xf32, #tpu.memory_space<smem>>
    %97 = vector.broadcast %96 : f32 to vector<2x128xf32>
    %98 = arith.mulf %97, %91 : vector<2x128xf32>
    %99 = arith.addf %69, %98 : vector<2x128xf32>
    %c4 = arith.constant 4 : index
    %100 = memref.load %arg2[%c4] : memref<99xf32, #tpu.memory_space<smem>>
    %101 = vector.broadcast %100 : f32 to vector<2x128xf32>
    %102 = arith.mulf %1, %101 : vector<2x128xf32>
    %c20 = arith.constant 20 : index
    %103 = memref.load %arg2[%c20] : memref<99xf32, #tpu.memory_space<smem>>
    %104 = vector.broadcast %103 : f32 to vector<2x128xf32>
    %105 = arith.mulf %3, %104 : vector<2x128xf32>
    %106 = arith.addf %102, %105 : vector<2x128xf32>
    %c36 = arith.constant 36 : index
    %107 = memref.load %arg2[%c36] : memref<99xf32, #tpu.memory_space<smem>>
    %108 = vector.broadcast %107 : f32 to vector<2x128xf32>
    %109 = arith.mulf %5, %108 : vector<2x128xf32>
    %110 = arith.addf %106, %109 : vector<2x128xf32>
    %c52 = arith.constant 52 : index
    %111 = memref.load %arg2[%c52] : memref<99xf32, #tpu.memory_space<smem>>
    %112 = vector.broadcast %111 : f32 to vector<2x128xf32>
    %113 = arith.addf %110, %112 : vector<2x128xf32>
    %cst_19 = arith.constant 5.000000e-01 : f32
    %114 = vector.broadcast %cst_19 : f32 to vector<2x128xf32>
    %115 = arith.mulf %114, %113 : vector<2x128xf32>
    %cst_20 = arith.constant 0.707106769 : f32
    %116 = vector.broadcast %cst_20 : f32 to vector<2x128xf32>
    %117 = arith.mulf %113, %116 : vector<2x128xf32>
    %118 = math.erf %117 : vector<2x128xf32>
    %cst_21 = arith.constant 1.000000e+00 : f32
    %119 = vector.broadcast %cst_21 : f32 to vector<2x128xf32>
    %120 = arith.addf %119, %118 : vector<2x128xf32>
    %121 = arith.mulf %115, %120 : vector<2x128xf32>
    %c71 = arith.constant 71 : index
    %122 = memref.load %arg2[%c71] : memref<99xf32, #tpu.memory_space<smem>>
    %123 = vector.broadcast %122 : f32 to vector<2x128xf32>
    %124 = arith.mulf %123, %121 : vector<2x128xf32>
    %125 = arith.addf %95, %124 : vector<2x128xf32>
    %c72 = arith.constant 72 : index
    %126 = memref.load %arg2[%c72] : memref<99xf32, #tpu.memory_space<smem>>
    %127 = vector.broadcast %126 : f32 to vector<2x128xf32>
    %128 = arith.mulf %127, %121 : vector<2x128xf32>
    %129 = arith.addf %99, %128 : vector<2x128xf32>
    %c5 = arith.constant 5 : index
    %130 = memref.load %arg2[%c5] : memref<99xf32, #tpu.memory_space<smem>>
    %131 = vector.broadcast %130 : f32 to vector<2x128xf32>
    %132 = arith.mulf %1, %131 : vector<2x128xf32>
    %c21 = arith.constant 21 : index
    %133 = memref.load %arg2[%c21] : memref<99xf32, #tpu.memory_space<smem>>
    %134 = vector.broadcast %133 : f32 to vector<2x128xf32>
    %135 = arith.mulf %3, %134 : vector<2x128xf32>
    %136 = arith.addf %132, %135 : vector<2x128xf32>
    %c37 = arith.constant 37 : index
    %137 = memref.load %arg2[%c37] : memref<99xf32, #tpu.memory_space<smem>>
    %138 = vector.broadcast %137 : f32 to vector<2x128xf32>
    %139 = arith.mulf %5, %138 : vector<2x128xf32>
    %140 = arith.addf %136, %139 : vector<2x128xf32>
    %c53 = arith.constant 53 : index
    %141 = memref.load %arg2[%c53] : memref<99xf32, #tpu.memory_space<smem>>
    %142 = vector.broadcast %141 : f32 to vector<2x128xf32>
    %143 = arith.addf %140, %142 : vector<2x128xf32>
    %cst_22 = arith.constant 5.000000e-01 : f32
    %144 = vector.broadcast %cst_22 : f32 to vector<2x128xf32>
    %145 = arith.mulf %144, %143 : vector<2x128xf32>
    %cst_23 = arith.constant 0.707106769 : f32
    %146 = vector.broadcast %cst_23 : f32 to vector<2x128xf32>
    %147 = arith.mulf %143, %146 : vector<2x128xf32>
    %148 = math.erf %147 : vector<2x128xf32>
    %cst_24 = arith.constant 1.000000e+00 : f32
    %149 = vector.broadcast %cst_24 : f32 to vector<2x128xf32>
    %150 = arith.addf %149, %148 : vector<2x128xf32>
    %151 = arith.mulf %145, %150 : vector<2x128xf32>
    %c73 = arith.constant 73 : index
    %152 = memref.load %arg2[%c73] : memref<99xf32, #tpu.memory_space<smem>>
    %153 = vector.broadcast %152 : f32 to vector<2x128xf32>
    %154 = arith.mulf %153, %151 : vector<2x128xf32>
    %155 = arith.addf %125, %154 : vector<2x128xf32>
    %c74 = arith.constant 74 : index
    %156 = memref.load %arg2[%c74] : memref<99xf32, #tpu.memory_space<smem>>
    %157 = vector.broadcast %156 : f32 to vector<2x128xf32>
    %158 = arith.mulf %157, %151 : vector<2x128xf32>
    %159 = arith.addf %129, %158 : vector<2x128xf32>
    %c6 = arith.constant 6 : index
    %160 = memref.load %arg2[%c6] : memref<99xf32, #tpu.memory_space<smem>>
    %161 = vector.broadcast %160 : f32 to vector<2x128xf32>
    %162 = arith.mulf %1, %161 : vector<2x128xf32>
    %c22 = arith.constant 22 : index
    %163 = memref.load %arg2[%c22] : memref<99xf32, #tpu.memory_space<smem>>
    %164 = vector.broadcast %163 : f32 to vector<2x128xf32>
    %165 = arith.mulf %3, %164 : vector<2x128xf32>
    %166 = arith.addf %162, %165 : vector<2x128xf32>
    %c38 = arith.constant 38 : index
    %167 = memref.load %arg2[%c38] : memref<99xf32, #tpu.memory_space<smem>>
    %168 = vector.broadcast %167 : f32 to vector<2x128xf32>
    %169 = arith.mulf %5, %168 : vector<2x128xf32>
    %170 = arith.addf %166, %169 : vector<2x128xf32>
    %c54 = arith.constant 54 : index
    %171 = memref.load %arg2[%c54] : memref<99xf32, #tpu.memory_space<smem>>
    %172 = vector.broadcast %171 : f32 to vector<2x128xf32>
    %173 = arith.addf %170, %172 : vector<2x128xf32>
    %cst_25 = arith.constant 5.000000e-01 : f32
    %174 = vector.broadcast %cst_25 : f32 to vector<2x128xf32>
    %175 = arith.mulf %174, %173 : vector<2x128xf32>
    %cst_26 = arith.constant 0.707106769 : f32
    %176 = vector.broadcast %cst_26 : f32 to vector<2x128xf32>
    %177 = arith.mulf %173, %176 : vector<2x128xf32>
    %178 = math.erf %177 : vector<2x128xf32>
    %cst_27 = arith.constant 1.000000e+00 : f32
    %179 = vector.broadcast %cst_27 : f32 to vector<2x128xf32>
    %180 = arith.addf %179, %178 : vector<2x128xf32>
    %181 = arith.mulf %175, %180 : vector<2x128xf32>
    %c75 = arith.constant 75 : index
    %182 = memref.load %arg2[%c75] : memref<99xf32, #tpu.memory_space<smem>>
    %183 = vector.broadcast %182 : f32 to vector<2x128xf32>
    %184 = arith.mulf %183, %181 : vector<2x128xf32>
    %185 = arith.addf %155, %184 : vector<2x128xf32>
    %c76 = arith.constant 76 : index
    %186 = memref.load %arg2[%c76] : memref<99xf32, #tpu.memory_space<smem>>
    %187 = vector.broadcast %186 : f32 to vector<2x128xf32>
    %188 = arith.mulf %187, %181 : vector<2x128xf32>
    %189 = arith.addf %159, %188 : vector<2x128xf32>
    %c7 = arith.constant 7 : index
    %190 = memref.load %arg2[%c7] : memref<99xf32, #tpu.memory_space<smem>>
    %191 = vector.broadcast %190 : f32 to vector<2x128xf32>
    %192 = arith.mulf %1, %191 : vector<2x128xf32>
    %c23 = arith.constant 23 : index
    %193 = memref.load %arg2[%c23] : memref<99xf32, #tpu.memory_space<smem>>
    %194 = vector.broadcast %193 : f32 to vector<2x128xf32>
    %195 = arith.mulf %3, %194 : vector<2x128xf32>
    %196 = arith.addf %192, %195 : vector<2x128xf32>
    %c39 = arith.constant 39 : index
    %197 = memref.load %arg2[%c39] : memref<99xf32, #tpu.memory_space<smem>>
    %198 = vector.broadcast %197 : f32 to vector<2x128xf32>
    %199 = arith.mulf %5, %198 : vector<2x128xf32>
    %200 = arith.addf %196, %199 : vector<2x128xf32>
    %c55 = arith.constant 55 : index
    %201 = memref.load %arg2[%c55] : memref<99xf32, #tpu.memory_space<smem>>
    %202 = vector.broadcast %201 : f32 to vector<2x128xf32>
    %203 = arith.addf %200, %202 : vector<2x128xf32>
    %cst_28 = arith.constant 5.000000e-01 : f32
    %204 = vector.broadcast %cst_28 : f32 to vector<2x128xf32>
    %205 = arith.mulf %204, %203 : vector<2x128xf32>
    %cst_29 = arith.constant 0.707106769 : f32
    %206 = vector.broadcast %cst_29 : f32 to vector<2x128xf32>
    %207 = arith.mulf %203, %206 : vector<2x128xf32>
    %208 = math.erf %207 : vector<2x128xf32>
    %cst_30 = arith.constant 1.000000e+00 : f32
    %209 = vector.broadcast %cst_30 : f32 to vector<2x128xf32>
    %210 = arith.addf %209, %208 : vector<2x128xf32>
    %211 = arith.mulf %205, %210 : vector<2x128xf32>
    %c77 = arith.constant 77 : index
    %212 = memref.load %arg2[%c77] : memref<99xf32, #tpu.memory_space<smem>>
    %213 = vector.broadcast %212 : f32 to vector<2x128xf32>
    %214 = arith.mulf %213, %211 : vector<2x128xf32>
    %215 = arith.addf %185, %214 : vector<2x128xf32>
    %c78 = arith.constant 78 : index
    %216 = memref.load %arg2[%c78] : memref<99xf32, #tpu.memory_space<smem>>
    %217 = vector.broadcast %216 : f32 to vector<2x128xf32>
    %218 = arith.mulf %217, %211 : vector<2x128xf32>
    %219 = arith.addf %189, %218 : vector<2x128xf32>
    %c8 = arith.constant 8 : index
    %220 = memref.load %arg2[%c8] : memref<99xf32, #tpu.memory_space<smem>>
    %221 = vector.broadcast %220 : f32 to vector<2x128xf32>
    %222 = arith.mulf %1, %221 : vector<2x128xf32>
    %c24 = arith.constant 24 : index
    %223 = memref.load %arg2[%c24] : memref<99xf32, #tpu.memory_space<smem>>
    %224 = vector.broadcast %223 : f32 to vector<2x128xf32>
    %225 = arith.mulf %3, %224 : vector<2x128xf32>
    %226 = arith.addf %222, %225 : vector<2x128xf32>
    %c40 = arith.constant 40 : index
    %227 = memref.load %arg2[%c40] : memref<99xf32, #tpu.memory_space<smem>>
    %228 = vector.broadcast %227 : f32 to vector<2x128xf32>
    %229 = arith.mulf %5, %228 : vector<2x128xf32>
    %230 = arith.addf %226, %229 : vector<2x128xf32>
    %c56 = arith.constant 56 : index
    %231 = memref.load %arg2[%c56] : memref<99xf32, #tpu.memory_space<smem>>
    %232 = vector.broadcast %231 : f32 to vector<2x128xf32>
    %233 = arith.addf %230, %232 : vector<2x128xf32>
    %cst_31 = arith.constant 5.000000e-01 : f32
    %234 = vector.broadcast %cst_31 : f32 to vector<2x128xf32>
    %235 = arith.mulf %234, %233 : vector<2x128xf32>
    %cst_32 = arith.constant 0.707106769 : f32
    %236 = vector.broadcast %cst_32 : f32 to vector<2x128xf32>
    %237 = arith.mulf %233, %236 : vector<2x128xf32>
    %238 = math.erf %237 : vector<2x128xf32>
    %cst_33 = arith.constant 1.000000e+00 : f32
    %239 = vector.broadcast %cst_33 : f32 to vector<2x128xf32>
    %240 = arith.addf %239, %238 : vector<2x128xf32>
    %241 = arith.mulf %235, %240 : vector<2x128xf32>
    %c79 = arith.constant 79 : index
    %242 = memref.load %arg2[%c79] : memref<99xf32, #tpu.memory_space<smem>>
    %243 = vector.broadcast %242 : f32 to vector<2x128xf32>
    %244 = arith.mulf %243, %241 : vector<2x128xf32>
    %245 = arith.addf %215, %244 : vector<2x128xf32>
    %c80 = arith.constant 80 : index
    %246 = memref.load %arg2[%c80] : memref<99xf32, #tpu.memory_space<smem>>
    %247 = vector.broadcast %246 : f32 to vector<2x128xf32>
    %248 = arith.mulf %247, %241 : vector<2x128xf32>
    %249 = arith.addf %219, %248 : vector<2x128xf32>
    %c9 = arith.constant 9 : index
    %250 = memref.load %arg2[%c9] : memref<99xf32, #tpu.memory_space<smem>>
    %251 = vector.broadcast %250 : f32 to vector<2x128xf32>
    %252 = arith.mulf %1, %251 : vector<2x128xf32>
    %c25 = arith.constant 25 : index
    %253 = memref.load %arg2[%c25] : memref<99xf32, #tpu.memory_space<smem>>
    %254 = vector.broadcast %253 : f32 to vector<2x128xf32>
    %255 = arith.mulf %3, %254 : vector<2x128xf32>
    %256 = arith.addf %252, %255 : vector<2x128xf32>
    %c41 = arith.constant 41 : index
    %257 = memref.load %arg2[%c41] : memref<99xf32, #tpu.memory_space<smem>>
    %258 = vector.broadcast %257 : f32 to vector<2x128xf32>
    %259 = arith.mulf %5, %258 : vector<2x128xf32>
    %260 = arith.addf %256, %259 : vector<2x128xf32>
    %c57 = arith.constant 57 : index
    %261 = memref.load %arg2[%c57] : memref<99xf32, #tpu.memory_space<smem>>
    %262 = vector.broadcast %261 : f32 to vector<2x128xf32>
    %263 = arith.addf %260, %262 : vector<2x128xf32>
    %cst_34 = arith.constant 5.000000e-01 : f32
    %264 = vector.broadcast %cst_34 : f32 to vector<2x128xf32>
    %265 = arith.mulf %264, %263 : vector<2x128xf32>
    %cst_35 = arith.constant 0.707106769 : f32
    %266 = vector.broadcast %cst_35 : f32 to vector<2x128xf32>
    %267 = arith.mulf %263, %266 : vector<2x128xf32>
    %268 = math.erf %267 : vector<2x128xf32>
    %cst_36 = arith.constant 1.000000e+00 : f32
    %269 = vector.broadcast %cst_36 : f32 to vector<2x128xf32>
    %270 = arith.addf %269, %268 : vector<2x128xf32>
    %271 = arith.mulf %265, %270 : vector<2x128xf32>
    %c81 = arith.constant 81 : index
    %272 = memref.load %arg2[%c81] : memref<99xf32, #tpu.memory_space<smem>>
    %273 = vector.broadcast %272 : f32 to vector<2x128xf32>
    %274 = arith.mulf %273, %271 : vector<2x128xf32>
    %275 = arith.addf %245, %274 : vector<2x128xf32>
    %c82 = arith.constant 82 : index
    %276 = memref.load %arg2[%c82] : memref<99xf32, #tpu.memory_space<smem>>
    %277 = vector.broadcast %276 : f32 to vector<2x128xf32>
    %278 = arith.mulf %277, %271 : vector<2x128xf32>
    %279 = arith.addf %249, %278 : vector<2x128xf32>
    %c10 = arith.constant 10 : index
    %280 = memref.load %arg2[%c10] : memref<99xf32, #tpu.memory_space<smem>>
    %281 = vector.broadcast %280 : f32 to vector<2x128xf32>
    %282 = arith.mulf %1, %281 : vector<2x128xf32>
    %c26 = arith.constant 26 : index
    %283 = memref.load %arg2[%c26] : memref<99xf32, #tpu.memory_space<smem>>
    %284 = vector.broadcast %283 : f32 to vector<2x128xf32>
    %285 = arith.mulf %3, %284 : vector<2x128xf32>
    %286 = arith.addf %282, %285 : vector<2x128xf32>
    %c42 = arith.constant 42 : index
    %287 = memref.load %arg2[%c42] : memref<99xf32, #tpu.memory_space<smem>>
    %288 = vector.broadcast %287 : f32 to vector<2x128xf32>
    %289 = arith.mulf %5, %288 : vector<2x128xf32>
    %290 = arith.addf %286, %289 : vector<2x128xf32>
    %c58 = arith.constant 58 : index
    %291 = memref.load %arg2[%c58] : memref<99xf32, #tpu.memory_space<smem>>
    %292 = vector.broadcast %291 : f32 to vector<2x128xf32>
    %293 = arith.addf %290, %292 : vector<2x128xf32>
    %cst_37 = arith.constant 5.000000e-01 : f32
    %294 = vector.broadcast %cst_37 : f32 to vector<2x128xf32>
    %295 = arith.mulf %294, %293 : vector<2x128xf32>
    %cst_38 = arith.constant 0.707106769 : f32
    %296 = vector.broadcast %cst_38 : f32 to vector<2x128xf32>
    %297 = arith.mulf %293, %296 : vector<2x128xf32>
    %298 = math.erf %297 : vector<2x128xf32>
    %cst_39 = arith.constant 1.000000e+00 : f32
    %299 = vector.broadcast %cst_39 : f32 to vector<2x128xf32>
    %300 = arith.addf %299, %298 : vector<2x128xf32>
    %301 = arith.mulf %295, %300 : vector<2x128xf32>
    %c83 = arith.constant 83 : index
    %302 = memref.load %arg2[%c83] : memref<99xf32, #tpu.memory_space<smem>>
    %303 = vector.broadcast %302 : f32 to vector<2x128xf32>
    %304 = arith.mulf %303, %301 : vector<2x128xf32>
    %305 = arith.addf %275, %304 : vector<2x128xf32>
    %c84 = arith.constant 84 : index
    %306 = memref.load %arg2[%c84] : memref<99xf32, #tpu.memory_space<smem>>
    %307 = vector.broadcast %306 : f32 to vector<2x128xf32>
    %308 = arith.mulf %307, %301 : vector<2x128xf32>
    %309 = arith.addf %279, %308 : vector<2x128xf32>
    %c11 = arith.constant 11 : index
    %310 = memref.load %arg2[%c11] : memref<99xf32, #tpu.memory_space<smem>>
    %311 = vector.broadcast %310 : f32 to vector<2x128xf32>
    %312 = arith.mulf %1, %311 : vector<2x128xf32>
    %c27 = arith.constant 27 : index
    %313 = memref.load %arg2[%c27] : memref<99xf32, #tpu.memory_space<smem>>
    %314 = vector.broadcast %313 : f32 to vector<2x128xf32>
    %315 = arith.mulf %3, %314 : vector<2x128xf32>
    %316 = arith.addf %312, %315 : vector<2x128xf32>
    %c43 = arith.constant 43 : index
    %317 = memref.load %arg2[%c43] : memref<99xf32, #tpu.memory_space<smem>>
    %318 = vector.broadcast %317 : f32 to vector<2x128xf32>
    %319 = arith.mulf %5, %318 : vector<2x128xf32>
    %320 = arith.addf %316, %319 : vector<2x128xf32>
    %c59 = arith.constant 59 : index
    %321 = memref.load %arg2[%c59] : memref<99xf32, #tpu.memory_space<smem>>
    %322 = vector.broadcast %321 : f32 to vector<2x128xf32>
    %323 = arith.addf %320, %322 : vector<2x128xf32>
    %cst_40 = arith.constant 5.000000e-01 : f32
    %324 = vector.broadcast %cst_40 : f32 to vector<2x128xf32>
    %325 = arith.mulf %324, %323 : vector<2x128xf32>
    %cst_41 = arith.constant 0.707106769 : f32
    %326 = vector.broadcast %cst_41 : f32 to vector<2x128xf32>
    %327 = arith.mulf %323, %326 : vector<2x128xf32>
    %328 = math.erf %327 : vector<2x128xf32>
    %cst_42 = arith.constant 1.000000e+00 : f32
    %329 = vector.broadcast %cst_42 : f32 to vector<2x128xf32>
    %330 = arith.addf %329, %328 : vector<2x128xf32>
    %331 = arith.mulf %325, %330 : vector<2x128xf32>
    %c85 = arith.constant 85 : index
    %332 = memref.load %arg2[%c85] : memref<99xf32, #tpu.memory_space<smem>>
    %333 = vector.broadcast %332 : f32 to vector<2x128xf32>
    %334 = arith.mulf %333, %331 : vector<2x128xf32>
    %335 = arith.addf %305, %334 : vector<2x128xf32>
    %c86 = arith.constant 86 : index
    %336 = memref.load %arg2[%c86] : memref<99xf32, #tpu.memory_space<smem>>
    %337 = vector.broadcast %336 : f32 to vector<2x128xf32>
    %338 = arith.mulf %337, %331 : vector<2x128xf32>
    %339 = arith.addf %309, %338 : vector<2x128xf32>
    %c12 = arith.constant 12 : index
    %340 = memref.load %arg2[%c12] : memref<99xf32, #tpu.memory_space<smem>>
    %341 = vector.broadcast %340 : f32 to vector<2x128xf32>
    %342 = arith.mulf %1, %341 : vector<2x128xf32>
    %c28 = arith.constant 28 : index
    %343 = memref.load %arg2[%c28] : memref<99xf32, #tpu.memory_space<smem>>
    %344 = vector.broadcast %343 : f32 to vector<2x128xf32>
    %345 = arith.mulf %3, %344 : vector<2x128xf32>
    %346 = arith.addf %342, %345 : vector<2x128xf32>
    %c44 = arith.constant 44 : index
    %347 = memref.load %arg2[%c44] : memref<99xf32, #tpu.memory_space<smem>>
    %348 = vector.broadcast %347 : f32 to vector<2x128xf32>
    %349 = arith.mulf %5, %348 : vector<2x128xf32>
    %350 = arith.addf %346, %349 : vector<2x128xf32>
    %c60 = arith.constant 60 : index
    %351 = memref.load %arg2[%c60] : memref<99xf32, #tpu.memory_space<smem>>
    %352 = vector.broadcast %351 : f32 to vector<2x128xf32>
    %353 = arith.addf %350, %352 : vector<2x128xf32>
    %cst_43 = arith.constant 5.000000e-01 : f32
    %354 = vector.broadcast %cst_43 : f32 to vector<2x128xf32>
    %355 = arith.mulf %354, %353 : vector<2x128xf32>
    %cst_44 = arith.constant 0.707106769 : f32
    %356 = vector.broadcast %cst_44 : f32 to vector<2x128xf32>
    %357 = arith.mulf %353, %356 : vector<2x128xf32>
    %358 = math.erf %357 : vector<2x128xf32>
    %cst_45 = arith.constant 1.000000e+00 : f32
    %359 = vector.broadcast %cst_45 : f32 to vector<2x128xf32>
    %360 = arith.addf %359, %358 : vector<2x128xf32>
    %361 = arith.mulf %355, %360 : vector<2x128xf32>
    %c87 = arith.constant 87 : index
    %362 = memref.load %arg2[%c87] : memref<99xf32, #tpu.memory_space<smem>>
    %363 = vector.broadcast %362 : f32 to vector<2x128xf32>
    %364 = arith.mulf %363, %361 : vector<2x128xf32>
    %365 = arith.addf %335, %364 : vector<2x128xf32>
    %c88 = arith.constant 88 : index
    %366 = memref.load %arg2[%c88] : memref<99xf32, #tpu.memory_space<smem>>
    %367 = vector.broadcast %366 : f32 to vector<2x128xf32>
    %368 = arith.mulf %367, %361 : vector<2x128xf32>
    %369 = arith.addf %339, %368 : vector<2x128xf32>
    %c13 = arith.constant 13 : index
    %370 = memref.load %arg2[%c13] : memref<99xf32, #tpu.memory_space<smem>>
    %371 = vector.broadcast %370 : f32 to vector<2x128xf32>
    %372 = arith.mulf %1, %371 : vector<2x128xf32>
    %c29 = arith.constant 29 : index
    %373 = memref.load %arg2[%c29] : memref<99xf32, #tpu.memory_space<smem>>
    %374 = vector.broadcast %373 : f32 to vector<2x128xf32>
    %375 = arith.mulf %3, %374 : vector<2x128xf32>
    %376 = arith.addf %372, %375 : vector<2x128xf32>
    %c45 = arith.constant 45 : index
    %377 = memref.load %arg2[%c45] : memref<99xf32, #tpu.memory_space<smem>>
    %378 = vector.broadcast %377 : f32 to vector<2x128xf32>
    %379 = arith.mulf %5, %378 : vector<2x128xf32>
    %380 = arith.addf %376, %379 : vector<2x128xf32>
    %c61 = arith.constant 61 : index
    %381 = memref.load %arg2[%c61] : memref<99xf32, #tpu.memory_space<smem>>
    %382 = vector.broadcast %381 : f32 to vector<2x128xf32>
    %383 = arith.addf %380, %382 : vector<2x128xf32>
    %cst_46 = arith.constant 5.000000e-01 : f32
    %384 = vector.broadcast %cst_46 : f32 to vector<2x128xf32>
    %385 = arith.mulf %384, %383 : vector<2x128xf32>
    %cst_47 = arith.constant 0.707106769 : f32
    %386 = vector.broadcast %cst_47 : f32 to vector<2x128xf32>
    %387 = arith.mulf %383, %386 : vector<2x128xf32>
    %388 = math.erf %387 : vector<2x128xf32>
    %cst_48 = arith.constant 1.000000e+00 : f32
    %389 = vector.broadcast %cst_48 : f32 to vector<2x128xf32>
    %390 = arith.addf %389, %388 : vector<2x128xf32>
    %391 = arith.mulf %385, %390 : vector<2x128xf32>
    %c89 = arith.constant 89 : index
    %392 = memref.load %arg2[%c89] : memref<99xf32, #tpu.memory_space<smem>>
    %393 = vector.broadcast %392 : f32 to vector<2x128xf32>
    %394 = arith.mulf %393, %391 : vector<2x128xf32>
    %395 = arith.addf %365, %394 : vector<2x128xf32>
    %c90 = arith.constant 90 : index
    %396 = memref.load %arg2[%c90] : memref<99xf32, #tpu.memory_space<smem>>
    %397 = vector.broadcast %396 : f32 to vector<2x128xf32>
    %398 = arith.mulf %397, %391 : vector<2x128xf32>
    %399 = arith.addf %369, %398 : vector<2x128xf32>
    %c14 = arith.constant 14 : index
    %400 = memref.load %arg2[%c14] : memref<99xf32, #tpu.memory_space<smem>>
    %401 = vector.broadcast %400 : f32 to vector<2x128xf32>
    %402 = arith.mulf %1, %401 : vector<2x128xf32>
    %c30 = arith.constant 30 : index
    %403 = memref.load %arg2[%c30] : memref<99xf32, #tpu.memory_space<smem>>
    %404 = vector.broadcast %403 : f32 to vector<2x128xf32>
    %405 = arith.mulf %3, %404 : vector<2x128xf32>
    %406 = arith.addf %402, %405 : vector<2x128xf32>
    %c46 = arith.constant 46 : index
    %407 = memref.load %arg2[%c46] : memref<99xf32, #tpu.memory_space<smem>>
    %408 = vector.broadcast %407 : f32 to vector<2x128xf32>
    %409 = arith.mulf %5, %408 : vector<2x128xf32>
    %410 = arith.addf %406, %409 : vector<2x128xf32>
    %c62 = arith.constant 62 : index
    %411 = memref.load %arg2[%c62] : memref<99xf32, #tpu.memory_space<smem>>
    %412 = vector.broadcast %411 : f32 to vector<2x128xf32>
    %413 = arith.addf %410, %412 : vector<2x128xf32>
    %cst_49 = arith.constant 5.000000e-01 : f32
    %414 = vector.broadcast %cst_49 : f32 to vector<2x128xf32>
    %415 = arith.mulf %414, %413 : vector<2x128xf32>
    %cst_50 = arith.constant 0.707106769 : f32
    %416 = vector.broadcast %cst_50 : f32 to vector<2x128xf32>
    %417 = arith.mulf %413, %416 : vector<2x128xf32>
    %418 = math.erf %417 : vector<2x128xf32>
    %cst_51 = arith.constant 1.000000e+00 : f32
    %419 = vector.broadcast %cst_51 : f32 to vector<2x128xf32>
    %420 = arith.addf %419, %418 : vector<2x128xf32>
    %421 = arith.mulf %415, %420 : vector<2x128xf32>
    %c91 = arith.constant 91 : index
    %422 = memref.load %arg2[%c91] : memref<99xf32, #tpu.memory_space<smem>>
    %423 = vector.broadcast %422 : f32 to vector<2x128xf32>
    %424 = arith.mulf %423, %421 : vector<2x128xf32>
    %425 = arith.addf %395, %424 : vector<2x128xf32>
    %c92 = arith.constant 92 : index
    %426 = memref.load %arg2[%c92] : memref<99xf32, #tpu.memory_space<smem>>
    %427 = vector.broadcast %426 : f32 to vector<2x128xf32>
    %428 = arith.mulf %427, %421 : vector<2x128xf32>
    %429 = arith.addf %399, %428 : vector<2x128xf32>
    %c15 = arith.constant 15 : index
    %430 = memref.load %arg2[%c15] : memref<99xf32, #tpu.memory_space<smem>>
    %431 = vector.broadcast %430 : f32 to vector<2x128xf32>
    %432 = arith.mulf %1, %431 : vector<2x128xf32>
    %c31 = arith.constant 31 : index
    %433 = memref.load %arg2[%c31] : memref<99xf32, #tpu.memory_space<smem>>
    %434 = vector.broadcast %433 : f32 to vector<2x128xf32>
    %435 = arith.mulf %3, %434 : vector<2x128xf32>
    %436 = arith.addf %432, %435 : vector<2x128xf32>
    %c47 = arith.constant 47 : index
    %437 = memref.load %arg2[%c47] : memref<99xf32, #tpu.memory_space<smem>>
    %438 = vector.broadcast %437 : f32 to vector<2x128xf32>
    %439 = arith.mulf %5, %438 : vector<2x128xf32>
    %440 = arith.addf %436, %439 : vector<2x128xf32>
    %c63 = arith.constant 63 : index
    %441 = memref.load %arg2[%c63] : memref<99xf32, #tpu.memory_space<smem>>
    %442 = vector.broadcast %441 : f32 to vector<2x128xf32>
    %443 = arith.addf %440, %442 : vector<2x128xf32>
    %cst_52 = arith.constant 5.000000e-01 : f32
    %444 = vector.broadcast %cst_52 : f32 to vector<2x128xf32>
    %445 = arith.mulf %444, %443 : vector<2x128xf32>
    %cst_53 = arith.constant 0.707106769 : f32
    %446 = vector.broadcast %cst_53 : f32 to vector<2x128xf32>
    %447 = arith.mulf %443, %446 : vector<2x128xf32>
    %448 = math.erf %447 : vector<2x128xf32>
    %cst_54 = arith.constant 1.000000e+00 : f32
    %449 = vector.broadcast %cst_54 : f32 to vector<2x128xf32>
    %450 = arith.addf %449, %448 : vector<2x128xf32>
    %451 = arith.mulf %445, %450 : vector<2x128xf32>
    %c93 = arith.constant 93 : index
    %452 = memref.load %arg2[%c93] : memref<99xf32, #tpu.memory_space<smem>>
    %453 = vector.broadcast %452 : f32 to vector<2x128xf32>
    %454 = arith.mulf %453, %451 : vector<2x128xf32>
    %455 = arith.addf %425, %454 : vector<2x128xf32>
    %c94 = arith.constant 94 : index
    %456 = memref.load %arg2[%c94] : memref<99xf32, #tpu.memory_space<smem>>
    %457 = vector.broadcast %456 : f32 to vector<2x128xf32>
    %458 = arith.mulf %457, %451 : vector<2x128xf32>
    %459 = arith.addf %429, %458 : vector<2x128xf32>
    %c16 = arith.constant 16 : index
    %460 = memref.load %arg2[%c16] : memref<99xf32, #tpu.memory_space<smem>>
    %461 = vector.broadcast %460 : f32 to vector<2x128xf32>
    %462 = arith.mulf %1, %461 : vector<2x128xf32>
    %c32 = arith.constant 32 : index
    %463 = memref.load %arg2[%c32] : memref<99xf32, #tpu.memory_space<smem>>
    %464 = vector.broadcast %463 : f32 to vector<2x128xf32>
    %465 = arith.mulf %3, %464 : vector<2x128xf32>
    %466 = arith.addf %462, %465 : vector<2x128xf32>
    %c48 = arith.constant 48 : index
    %467 = memref.load %arg2[%c48] : memref<99xf32, #tpu.memory_space<smem>>
    %468 = vector.broadcast %467 : f32 to vector<2x128xf32>
    %469 = arith.mulf %5, %468 : vector<2x128xf32>
    %470 = arith.addf %466, %469 : vector<2x128xf32>
    %c64 = arith.constant 64 : index
    %471 = memref.load %arg2[%c64] : memref<99xf32, #tpu.memory_space<smem>>
    %472 = vector.broadcast %471 : f32 to vector<2x128xf32>
    %473 = arith.addf %470, %472 : vector<2x128xf32>
    %cst_55 = arith.constant 5.000000e-01 : f32
    %474 = vector.broadcast %cst_55 : f32 to vector<2x128xf32>
    %475 = arith.mulf %474, %473 : vector<2x128xf32>
    %cst_56 = arith.constant 0.707106769 : f32
    %476 = vector.broadcast %cst_56 : f32 to vector<2x128xf32>
    %477 = arith.mulf %473, %476 : vector<2x128xf32>
    %478 = math.erf %477 : vector<2x128xf32>
    %cst_57 = arith.constant 1.000000e+00 : f32
    %479 = vector.broadcast %cst_57 : f32 to vector<2x128xf32>
    %480 = arith.addf %479, %478 : vector<2x128xf32>
    %481 = arith.mulf %475, %480 : vector<2x128xf32>
    %c95 = arith.constant 95 : index
    %482 = memref.load %arg2[%c95] : memref<99xf32, #tpu.memory_space<smem>>
    %483 = vector.broadcast %482 : f32 to vector<2x128xf32>
    %484 = arith.mulf %483, %481 : vector<2x128xf32>
    %485 = arith.addf %455, %484 : vector<2x128xf32>
    %c96 = arith.constant 96 : index
    %486 = memref.load %arg2[%c96] : memref<99xf32, #tpu.memory_space<smem>>
    %487 = vector.broadcast %486 : f32 to vector<2x128xf32>
    %488 = arith.mulf %487, %481 : vector<2x128xf32>
    %489 = arith.addf %459, %488 : vector<2x128xf32>
    %c0_58 = arith.constant 0 : index
    %490 = memref.load %arg2[%c0_58] : memref<99xf32, #tpu.memory_space<smem>>
    %c0_59 = arith.constant 0 : index
    %c0_60 = arith.constant 0 : index
    %c0_61 = arith.constant 0 : index
    %c0_62 = arith.constant 0 : index
    %491 = vector.load %arg3[%c0_59, %c0_60, %c0_61, %c0_62] : memref<1x2x2x128xf32, #tpu.memory_space<vmem>>, vector<1x1x2x128xf32>
    %492 = vector.shape_cast %491 : vector<1x1x2x128xf32> to vector<2x128xf32>
    %493 = vector.broadcast %490 : f32 to vector<2x128xf32>
    %494 = arith.mulf %493, %492 : vector<2x128xf32>
    %495 = arith.addf %494, %485 : vector<2x128xf32>
    %c0_63 = arith.constant 0 : index
    %c0_64 = arith.constant 0 : index
    %c0_65 = arith.constant 0 : index
    %c0_66 = arith.constant 0 : index
    %496 = vector.load %arg5[%c0_63, %c0_64, %c0_65, %c0_66] : memref<1x2x2x128xf32, #tpu.memory_space<vmem>>, vector<1x1x2x128xf32>
    %497 = vector.shape_cast %496 : vector<1x1x2x128xf32> to vector<2x128xf32>
    %498 = vector.shape_cast %495 : vector<2x128xf32> to vector<1x1x2x128xf32>
    tpu.vector_store %arg5[%c0_63, %c0_64, %c0_65, %c0_66], %498 {strides = array<i32>} : memref<1x2x2x128xf32, #tpu.memory_space<vmem>>, vector<1x1x2x128xf32>,
    %c0_67 = arith.constant 0 : index
    %c1_68 = arith.constant 1 : index
    %c0_69 = arith.constant 0 : index
    %c0_70 = arith.constant 0 : index
    %499 = vector.load %arg3[%c0_67, %c1_68, %c0_69, %c0_70] : memref<1x2x2x128xf32, #tpu.memory_space<vmem>>, vector<1x1x2x128xf32>
    %500 = vector.shape_cast %499 : vector<1x1x2x128xf32> to vector<2x128xf32>
    %501 = vector.broadcast %490 : f32 to vector<2x128xf32>
    %502 = arith.mulf %501, %500 : vector<2x128xf32>
    %503 = arith.addf %502, %489 : vector<2x128xf32>
    %c0_71 = arith.constant 0 : index
    %c1_72 = arith.constant 1 : index
    %c0_73 = arith.constant 0 : index
    %c0_74 = arith.constant 0 : index
    %504 = vector.load %arg5[%c0_71, %c1_72, %c0_73, %c0_74] : memref<1x2x2x128xf32, #tpu.memory_space<vmem>>, vector<1x1x2x128xf32>
    %505 = vector.shape_cast %504 : vector<1x1x2x128xf32> to vector<2x128xf32>
    %506 = vector.shape_cast %503 : vector<2x128xf32> to vector<1x1x2x128xf32>
    tpu.vector_store %arg5[%c0_71, %c1_72, %c0_73, %c0_74], %506 {strides = array<i32>} : memref<1x2x2x128xf32, #tpu.memory_space<vmem>>, vector<1x1x2x128xf32>,
    return
  }
  func.func @transform_0(%arg0: i32, %arg1: i32, %arg2: memref<99xf32, #tpu.memory_space<smem>>) -> (i32, i32, i32, i32) {
    %c0_i32 = arith.constant 0 : i32
    %c0_i32_0 = arith.constant 0 : i32
    %c0_i32_1 = arith.constant 0 : i32
    return %arg0, %c0_i32, %arg1, %c0_i32_0 : i32, i32, i32, i32
  }
  func.func @transform_1(%arg0: i32, %arg1: i32, %arg2: memref<99xf32, #tpu.memory_space<smem>>) -> (i32, i32, i32, i32) {
    %c0_i32 = arith.constant 0 : i32
    %c0_i32_0 = arith.constant 0 : i32
    %c0_i32_1 = arith.constant 0 : i32
    return %arg0, %c0_i32, %arg1, %c0_i32_0 : i32, i32, i32, i32
  }
  func.func @transform_2(%arg0: i32, %arg1: i32, %arg2: memref<99xf32, #tpu.memory_space<smem>>) -> (i32, i32, i32, i32) {
    %c0_i32 = arith.constant 0 : i32
    %c0_i32_0 = arith.constant 0 : i32
    %c0_i32_1 = arith.constant 0 : i32
    return %arg0, %c0_i32, %arg1, %c0_i32_0 : i32, i32, i32, i32
  }
}

</mosaic_0001>

<llo_original>
// kernel: refinement_forward.1
$region0: #{refinement_forward.1}
  #allocation0 [shape = 'u32[]', space=smem, size = 0x4, offset = 0x4, fixed_abs, tag = 'smem constant byte address 0x4 - core index']
  #allocation1 [shape = 'u32[72,128]{1,0:T(1,128)}', space=vmem, size = 0x9000, scoped, tag = 'internal scratch']
  #allocation2 [shape = 's32[1]{0}', space=sflag, size = 0x4, scoped, tag = 'scoped memory for refinement_forward.1']
  #allocation3 [shape = 'u8[512]{0}', space=smem, size = 0x200, scoped, tag = 'prefetched SMEM operand 0']
  %s0 = inlined_call_operand.vmem [shape: f32[99], index: 0, kind: input, shape index: {}]
  %s1 = inlined_call_operand.vmem [shape: f32[2,2,2,128], index: 1, kind: input, shape index: {}]
  %s2 = inlined_call_operand.vmem [shape: f32[2,3,2,128], index: 2, kind: input, shape index: {}]
  %s3 = inlined_call_operand.vmem [shape: f32[2,2,2,128], index: 3, kind: output, shape index: {}]
  %s4 = sld [smem:[#allocation0]]
  $region41: #{refinement_forward.1} parent=0
    _
  %s6 = ssub.s32 1, %s4
  %s7 = scalar_select 0, %s6, %s4
  %s9 = sshll.u32 %s0, 4
  %s10 = int_to_ptr.vmem [resolvable:$true] %s9
  %12 = dma.vmem_to_smem %s10, 16, [#allocation3], [#allocation2]
  %14 = dma.done [#allocation2], 16
  %15 = sfence
  loop: start=0, step=1, limit=4
  $region2: #{refinement_forward.1} parent=0 // loop_pre_header
    _
  $region3: #{refinement_forward.1} parent=0 // loop_header
    %s17 = sphi 0, %s21
    %p18 = scmp.ge.s32.totalorder %s17, 4
    %s24 = sphi 0, %s36
    %s25 = sphi 0, %s32
    %s26 = sphi 0, %s24
    %s27 = sphi 0, %s25
    %s28 = sphi 0, %s26
    %s29 = sphi 0, %s27
    %s41 = sphi 0, %s43
    %s44 = sphi 0, %s41
    %s45 = sphi 0, %s44
    %s61 = sphi 0, %s45
    %s69 = sphi 0, %s71
    %s72 = sphi 0, %s69
    %s73 = sphi 0, %s72
    %s89 = sphi 0, %s73
    %s97 = sphi 0, %s99
    %s100 = sphi 0, %s97
    %s101 = sphi 0, %s100
    %s117 = sphi 0, %s101
  $region4: #{refinement_forward.1} parent=0 // loop_header_branch
    %20 = sbr.rel (%p18) target = $region8
  $region5: #{refinement_forward.1} parent=0 // loop_body
    %s22 = ssub.s32 %s17, 1
    %s23 = ssub.s32 %s17, 2
    %s30 = sadd.s32 1, %s25
    %p31 = scmp.ge.s32.totalorder %s30, 1
    %s32 = scalar_select %p31, 0, %s30
    %s33 = sadd.s32 1, %s24
    %s34 = scalar_select %p31, %s33, %s24
    %p35 = scmp.ge.s32.totalorder %s34, 2
    %s36 = scalar_select %p35, 0, %s34
    %s37 = ssub.s32 %s24, %s36
    %s38 = ssub.s32 %s25, %s32
    %s39 = sor.u32 %s37, %s38
    %p40 = scmp.eq.s32.totalorder %s39, 0
    %s42 = sadd.s32 %s41, 1
    %s43 = scalar_select %p40, %s41, %s42
    %p46 = pneg %p40
    %p47 = scmp.eq.s32.totalorder %s17, 1
    %p48 = por %p46, %p47
    %p49 = scmp.ne.s32.totalorder %s41, %s44
    %p50 = scmp.eq.s32.totalorder %s17, 0
    %p51 = por %p49, %p50
    %p52 = scmp.ne.s32.totalorder %s41, %s44
    %p53 = scmp.eq.s32.totalorder %s22, 1
    %p54 = por %p52, %p53
    %p55 = scmp.ne.s32.totalorder %s44, %s45
    %p56 = scmp.eq.s32.totalorder %s22, 0
    %p57 = por %p55, %p56
    %p58 = scmp.ne.s32.totalorder %s44, %s45
    %p59 = scmp.eq.s32.totalorder %s23, 1
    %p60 = por %p58, %p59
    %p62 = scmp.ne.s32.totalorder %s45, %s61
    %p63 = scmp.eq.s32.totalorder %s23, 0
    %p64 = por %p62, %p63
    %s65 = ssub.s32 %s24, %s36
    %s66 = ssub.s32 %s25, %s32
    %s67 = sor.u32 %s65, %s66
    %p68 = scmp.eq.s32.totalorder %s67, 0
    %s70 = sadd.s32 %s69, 1
    %s71 = scalar_select %p68, %s69, %s70
    %p74 = pneg %p68
    %p75 = scmp.eq.s32.totalorder %s17, 1
    %p76 = por %p74, %p75
    %p77 = scmp.ne.s32.totalorder %s69, %s72
    %p78 = scmp.eq.s32.totalorder %s17, 0
    %p79 = por %p77, %p78
    %p80 = scmp.ne.s32.totalorder %s69, %s72
    %p81 = scmp.eq.s32.totalorder %s22, 1
    %p82 = por %p80, %p81
    %p83 = scmp.ne.s32.totalorder %s72, %s73
    %p84 = scmp.eq.s32.totalorder %s22, 0
    %p85 = por %p83, %p84
    %p86 = scmp.ne.s32.totalorder %s72, %s73
    %p87 = scmp.eq.s32.totalorder %s23, 1
    %p88 = por %p86, %p87
    %p90 = scmp.ne.s32.totalorder %s73, %s89
    %p91 = scmp.eq.s32.totalorder %s23, 0
    %p92 = por %p90, %p91
    %s93 = ssub.s32 %s24, %s36
    %s94 = ssub.s32 %s25, %s32
    %s95 = sor.u32 %s93, %s94
    %p96 = scmp.eq.s32.totalorder %s95, 0
    %s98 = sadd.s32 %s97, 1
    %s99 = scalar_select %p96, %s97, %s98
    %p102 = pneg %p96
    %p103 = scmp.eq.s32.totalorder %s17, 1
    %p104 = por %p102, %p103
    %p105 = scmp.ne.s32.totalorder %s97, %s100
    %p106 = scmp.eq.s32.totalorder %s17, 0
    %p107 = por %p105, %p106
    %p108 = scmp.ne.s32.totalorder %s97, %s100
    %p109 = scmp.eq.s32.totalorder %s22, 1
    %p110 = por %p108, %p109
    %p111 = scmp.ne.s32.totalorder %s100, %s101
    %p112 = scmp.eq.s32.totalorder %s22, 0
    %p113 = por %p111, %p112
    %p114 = scmp.ne.s32.totalorder %s100, %s101
    %p115 = scmp.eq.s32.totalorder %s23, 1
    %p116 = por %p114, %p115
    %p118 = scmp.ne.s32.totalorder %s101, %s117
    %p119 = scmp.eq.s32.totalorder %s23, 0
    %p120 = por %p118, %p119
    %p121 = scmp.le.s32.totalorder 1, %s17
    %p122 = scmp.lt.s32.totalorder %s17, 3
    %p123 = pnand %p121, %p122
    %p124 = pneg %p123
    // Predicated region
    $region9: #{refinement_forward.1} parent=5 // pred_check
      _
    $region10: #{refinement_forward.1} parent=5 // pred_check_branch
      %126 = sbr.rel (%p123) target = $region12
    $region11: #{refinement_forward.1} parent=5 // pred_region
      %s127 = ssub.s32 %s17, 1
    $region12: #{refinement_forward.1} parent=5 // pred_fallthru
      _
    %p128 = scmp.lt.s32.totalorder %s17, 2
    // Predicated region
    $region13: #{refinement_forward.1} parent=5 // pred_check
      %p129 = pneg %p128
    $region14: #{refinement_forward.1} parent=5 // pred_check_branch
      %131 = sbr.rel (%p129) target = $region16
    $region15: #{refinement_forward.1} parent=5 // pred_region
      // Predicated region
      $region17: #{refinement_forward.1} parent=15 // pred_check
        %p132 = pneg %p51
      $region18: #{refinement_forward.1} parent=15 // pred_check_branch
        %134 = sbr.rel (%p132) target = $region20
      $region19: #{refinement_forward.1} parent=15 // pred_region
        %p135 = scmp.lt.s32.totalorder %s24, 1
        %s136 = scalar_select %p135, %s24, 1
        %p137 = scmp.lt.s32.totalorder %s25, 0
        %s138 = scalar_select %p137, %s25, 0
        %s139 = smul.addr %s136, 2
        %s140 = sadd.s32 %s138, %s139
        %s141 = smul.addr %s140, 2
        %s142 = scalar_lea.vmem %s1, %s141
      $region20: #{refinement_forward.1} parent=15 // pred_fallthru
        _
      // Predicated region
      $region21: #{refinement_forward.1} parent=15 // pred_check
        %p143 = pneg %p79
      $region22: #{refinement_forward.1} parent=15 // pred_check_branch
        %145 = sbr.rel (%p143) target = $region24
      $region23: #{refinement_forward.1} parent=15 // pred_region
        %p146 = scmp.lt.s32.totalorder %s24, 1
        %s147 = scalar_select %p146, %s24, 1
        %p148 = scmp.lt.s32.totalorder %s25, 0
        %s149 = scalar_select %p148, %s25, 0
        %s150 = smul.addr %s147, 3
        %s151 = sadd.s32 %s149, %s150
        %s152 = smul.addr %s151, 2
        %s153 = scalar_lea.vmem %s2, %s152
      $region24: #{refinement_forward.1} parent=15 // pred_fallthru
        _
    $region16: #{refinement_forward.1} parent=5 // pred_fallthru
      _
    %p154 = scmp.le.s32.totalorder 1, %s17
    %p155 = scmp.lt.s32.totalorder %s17, 3
    %p156 = pnand %p154, %p155
    %p157 = pneg %p156
    // Predicated region
    $region25: #{refinement_forward.1} parent=5 // pred_check
      _
    $region26: #{refinement_forward.1} parent=5 // pred_check_branch
      %159 = sbr.rel (%p156) target = $region28
    $region27: #{refinement_forward.1} parent=5 // pred_region
      %s160 = ssub.s32 %s17, 1
      %p161 = scmp.lt.s32.totalorder %s26, 1
      %s162 = scalar_select %p161, %s26, 1
      %p163 = scmp.lt.s32.totalorder %s27, 0
      %s164 = scalar_select %p163, %s27, 0
      %s165 = smul.addr %s162, 2
      %s166 = sadd.s32 %s164, %s165
      %s167 = smul.addr %s166, 2
      %s168 = scalar_lea.vmem %s1, %s167
      %p169 = pneg %p57
      %p170 = pneg %p54
      %p171 = scmp.lt.s32.totalorder %s26, 1
      %s172 = scalar_select %p171, %s26, 1
      %p173 = scmp.lt.s32.totalorder %s27, 0
      %s174 = scalar_select %p173, %s27, 0
      %s175 = smul.addr %s172, 3
      %s176 = sadd.s32 %s174, %s175
      %s177 = smul.addr %s176, 2
      %s178 = scalar_lea.vmem %s2, %s177
      %p179 = pneg %p85
      %p180 = pneg %p82
      %p181 = pneg %p113
      %p182 = pneg %p110
      %p183 = scmp.lt.s32.totalorder %s26, 1
      %s184 = scalar_select %p183, %s26, 1
      %p185 = scmp.lt.s32.totalorder %s27, 0
      %s186 = scalar_select %p185, %s27, 0
      %s187 = smul.addr %s184, 2
      %s188 = sadd.s32 %s186, %s187
      %s189 = smul.addr %s188, 2
      %s190 = scalar_lea.vmem %s3, %s189
      %p191 = scmp.lt.s32.totalorder %s26, 1
      %s192 = scalar_select %p191, %s26, 1
      %p193 = scmp.lt.s32.totalorder %s27, 0
      %s194 = scalar_select %p193, %s27, 0
      %s195 = smul.addr %s192, 2
      %s196 = sadd.s32 %s194, %s195
      %s197 = smul.addr %s196, 2
      %s198 = scalar_lea.vmem %s1, %s197
      %p199 = scmp.lt.s32.totalorder %s26, 1
      %s200 = scalar_select %p199, %s26, 1
      %p201 = scmp.lt.s32.totalorder %s27, 0
      %s202 = scalar_select %p201, %s27, 0
      %s203 = smul.addr %s200, 3
      %s204 = sadd.s32 %s202, %s203
      %s205 = smul.addr %s204, 2
      %s206 = scalar_lea.vmem %s2, %s205
      %p207 = scmp.lt.s32.totalorder %s26, 1
      %s208 = scalar_select %p207, %s26, 1
      %p209 = scmp.lt.s32.totalorder %s27, 0
      %s210 = scalar_select %p209, %s27, 0
      %s211 = smul.addr %s208, 2
      %s212 = sadd.s32 %s210, %s211
      %s213 = smul.addr %s212, 2
      %s214 = scalar_lea.vmem %s3, %s213
      %v215 = vld [vmem:[%s206] sm:$0x3]
      %s216 = scalar_lea.vmem %s206, 2
      %v217 = vld [vmem:[%s216] sm:$0x3]
      %s218 = scalar_lea.vmem %s206, 4
      %v219 = vld [vmem:[%s218] sm:$0x3]
      %s220 = sld [smem:[#allocation3 + $0x61]]
      %v221 = vstv %s220
      %s222 = sld [smem:[#allocation3 + $0x62]]
      %v223 = vstv %s222
      %s224 = sld [smem:[#allocation3 + $0x1]]
      %v225 = vstv %s224
      %v226 = vmul.f32 %v215, %v225
      %s227 = sld [smem:[#allocation3 + $0x11]]
      %v228 = vstv %s227
      %v229 = vmul.f32 %v217, %v228
      %v230 = vadd.f32 %v226, %v229
      %s231 = sld [smem:[#allocation3 + $0x21]]
      %v232 = vstv %s231
      %v233 = vmul.f32 %v219, %v232
      %v234 = vadd.f32 %v230, %v233
      %s235 = sld [smem:[#allocation3 + $0x31]]
      %v236 = vstv %s235
      %v237 = vadd.f32 %v234, %v236
      %v238 = vmul.f32 %v237, 0.5
      %v239 = vmul.f32 %v237, 0.70710677
      %v240 = vmul.f32 %v239, %v239
      %v241 = vmin.f32 16.0, %v240
      %v242 = vmul.f32 %v241, 2.1237322e-06
      %v243 = vadd.f32 %v242, 0.00028619796
      %v244 = vmul.f32 %v241, %v243
      %v245 = vadd.f32 %v244, 0.0036580483
      %v246 = vmul.f32 %v241, %v245
      %v247 = vadd.f32 %v246, 0.05243302
      %v248 = vmul.f32 %v241, %v247
      %v249 = vadd.f32 %v248, 0.18741608
      %v250 = vmul.f32 %v241, %v249
      %v251 = vadd.f32 %v250, 1.1283791
      %v252 = vmul.f32 %v239, %v251
      %v253 = vmul.f32 %v241, 3.8918573e-05
      %v254 = vadd.f32 %v253, 0.001143296
      %v255 = vmul.f32 %v241, %v254
      %v256 = vadd.f32 %v255, 0.014752088
      %v257 = vmul.f32 %v241, %v256
      %v258 = vadd.f32 %v257, 0.112945676
      %v259 = vmul.f32 %v241, %v258
      %v260 = vadd.f32 %v259, 0.4994258
      %v261 = vmul.f32 %v241, %v260
      %v262 = vadd.f32 %v261, 1.0
      %v263 = vrcp.pop %v262
      %v264 = vmul.f32 %v262, %v263
      %v265 = vsub.f32 1.0, %v264
      %v266 = vmul.f32 %v263, %v265
      %v267 = vadd.f32 %v263, %v266
      %vm268 = vweird.f32 %v262
      %vm269 = vweird.f32 %v263
      %vm270 = vmor %vm268, %vm269
      %v271 = vsel %vm270, %v263, %v267
      %v272 = vand.u32 2147483647, %v262
      %vm273 = vcmp.eq.f32.partialorder %v272, 8.507059e+37
      %v274 = vand.u32 %v262, 2147483648
      %v275 = vor.u32 1.1754944e-38, %v274
      %v276 = vsel %vm273, %v275, %v271
      %v277 = vmul.f32 %v252, %v276
      %v278 = vmin.f32 %v277, 1.0
      %v279 = vmax.f32 %v278, -1.0
      %v280 = vadd.f32 %v279, 1.0
      %v281 = vmul.f32 %v238, %v280
      %s282 = sld [smem:[#allocation3 + $0x41]]
      %v283 = vstv %s282
      %v284 = vmul.f32 %v283, %v281
      %v285 = vadd.f32 %v221, %v284
      %s286 = sld [smem:[#allocation3 + $0x42]]
      %v287 = vstv %s286
      %v288 = vmul.f32 %v287, %v281
      %v289 = vadd.f32 %v223, %v288
      %s290 = sld [smem:[#allocation3 + $0x2]]
      %v291 = vstv %s290
      %v292 = vmul.f32 %v215, %v291
      %s293 = sld [smem:[#allocation3 + $0x12]]
      %v294 = vstv %s293
      %v295 = vmul.f32 %v217, %v294
      %v296 = vadd.f32 %v292, %v295
      %s297 = sld [smem:[#allocation3 + $0x22]]
      %v298 = vstv %s297
      %v299 = vmul.f32 %v219, %v298
      %v300 = vadd.f32 %v296, %v299
      %s301 = sld [smem:[#allocation3 + $0x32]]
      %v302 = vstv %s301
      %v303 = vadd.f32 %v300, %v302
      %v304 = vmul.f32 %v303, 0.5
      %v305 = vmul.f32 %v303, 0.70710677
      %v306 = vmul.f32 %v305, %v305
      %v307 = vmin.f32 16.0, %v306
      %v308 = vmul.f32 %v307, 2.1237322e-06
      %v309 = vadd.f32 %v308, 0.00028619796
      %v310 = vmul.f32 %v307, %v309
      %v311 = vadd.f32 %v310, 0.0036580483
      %v312 = vmul.f32 %v307, %v311
      %v313 = vadd.f32 %v312, 0.05243302
      %v314 = vmul.f32 %v307, %v313
      %v315 = vadd.f32 %v314, 0.18741608
      %v316 = vmul.f32 %v307, %v315
      %v317 = vadd.f32 %v316, 1.1283791
      %v318 = vmul.f32 %v305, %v317
      %v319 = vmul.f32 %v307, 3.8918573e-05
      %v320 = vadd.f32 %v319, 0.001143296
      %v321 = vmul.f32 %v307, %v320
      %v322 = vadd.f32 %v321, 0.014752088
      %v323 = vmul.f32 %v307, %v322
      %v324 = vadd.f32 %v323, 0.112945676
      %v325 = vmul.f32 %v307, %v324
      %v326 = vadd.f32 %v325, 0.4994258
      %v327 = vmul.f32 %v307, %v326
      %v328 = vadd.f32 %v327, 1.0
      %v329 = vrcp.pop %v328
      %v330 = vmul.f32 %v328, %v329
      %v331 = vsub.f32 1.0, %v330
      %v332 = vmul.f32 %v329, %v331
      %v333 = vadd.f32 %v329, %v332
      %vm334 = vweird.f32 %v328
      %vm335 = vweird.f32 %v329
      %vm336 = vmor %vm334, %vm335
      %v337 = vsel %vm336, %v329, %v333
      %v338 = vand.u32 2147483647, %v328
      %vm339 = vcmp.eq.f32.partialorder %v338, 8.507059e+37
      %v340 = vand.u32 %v328, 2147483648
      %v341 = vor.u32 1.1754944e-38, %v340
      %v342 = vsel %vm339, %v341, %v337
      %v343 = vmul.f32 %v318, %v342
      %v344 = vmin.f32 %v343, 1.0
      %v345 = vmax.f32 %v344, -1.0
      %v346 = vadd.f32 %v345, 1.0
      %v347 = vmul.f32 %v304, %v346
      %s348 = sld [smem:[#allocation3 + $0x43]]
      %v349 = vstv %s348
      %v350 = vmul.f32 %v349, %v347
      %v351 = vadd.f32 %v285, %v350
      %s352 = sld [smem:[#allocation3 + $0x44]]
      %v353 = vstv %s352
      %v354 = vmul.f32 %v353, %v347
      %v355 = vadd.f32 %v289, %v354
      %s356 = sld [smem:[#allocation3 + $0x3]]
      %v357 = vstv %s356
      %v358 = vmul.f32 %v215, %v357
      %s359 = sld [smem:[#allocation3 + $0x13]]
      %v360 = vstv %s359
      %v361 = vmul.f32 %v217, %v360
      %v362 = vadd.f32 %v358, %v361
      %s363 = sld [smem:[#allocation3 + $0x23]]
      %v364 = vstv %s363
      %v365 = vmul.f32 %v219, %v364
      %v366 = vadd.f32 %v362, %v365
      %s367 = sld [smem:[#allocation3 + $0x33]]
      %v368 = vstv %s367
      %v369 = vadd.f32 %v366, %v368
      %v370 = vmul.f32 %v369, 0.5
      %v371 = vmul.f32 %v369, 0.70710677
      %v372 = vmul.f32 %v371, %v371
      %v373 = vmin.f32 16.0, %v372
      %v374 = vmul.f32 %v373, 2.1237322e-06
      %v375 = vadd.f32 %v374, 0.00028619796
      %v376 = vmul.f32 %v373, %v375
      %v377 = vadd.f32 %v376, 0.0036580483
      %v378 = vmul.f32 %v373, %v377
      %v379 = vadd.f32 %v378, 0.05243302
      %v380 = vmul.f32 %v373, %v379
      %v381 = vadd.f32 %v380, 0.18741608
      %v382 = vmul.f32 %v373, %v381
      %v383 = vadd.f32 %v382, 1.1283791
      %v384 = vmul.f32 %v371, %v383
      %v385 = vmul.f32 %v373, 3.8918573e-05
      %v386 = vadd.f32 %v385, 0.001143296
      %v387 = vmul.f32 %v373, %v386
      %v388 = vadd.f32 %v387, 0.014752088
      %v389 = vmul.f32 %v373, %v388
      %v390 = vadd.f32 %v389, 0.112945676
      %v391 = vmul.f32 %v373, %v390
      %v392 = vadd.f32 %v391, 0.4994258
      %v393 = vmul.f32 %v373, %v392
      %v394 = vadd.f32 %v393, 1.0
      %v395 = vrcp.pop %v394
      %v396 = vmul.f32 %v394, %v395
      %v397 = vsub.f32 1.0, %v396
      %v398 = vmul.f32 %v395, %v397
      %v399 = vadd.f32 %v395, %v398
      %vm400 = vweird.f32 %v394
      %vm401 = vweird.f32 %v395
      %vm402 = vmor %vm400, %vm401
      %v403 = vsel %vm402, %v395, %v399
      %v404 = vand.u32 2147483647, %v394
      %vm405 = vcmp.eq.f32.partialorder %v404, 8.507059e+37
      %v406 = vand.u32 %v394, 2147483648
      %v407 = vor.u32 1.1754944e-38, %v406
      %v408 = vsel %vm405, %v407, %v403
      %v409 = vmul.f32 %v384, %v408
      %v410 = vmin.f32 %v409, 1.0
      %v411 = vmax.f32 %v410, -1.0
      %v412 = vadd.f32 %v411, 1.0
      %v413 = vmul.f32 %v370, %v412
      %s414 = sld [smem:[#allocation3 + $0x45]]
      %v415 = vstv %s414
      %v416 = vmul.f32 %v415, %v413
      %v417 = vadd.f32 %v351, %v416
      %s418 = sld [smem:[#allocation3 + $0x46]]
      %v419 = vstv %s418
      %v420 = vmul.f32 %v419, %v413
      %v421 = vadd.f32 %v355, %v420
      %s422 = sld [smem:[#allocation3 + $0x4]]
      %v423 = vstv %s422
      %v424 = vmul.f32 %v215, %v423
      %s425 = sld [smem:[#allocation3 + $0x14]]
      %v426 = vstv %s425
      %v427 = vmul.f32 %v217, %v426
      %v428 = vadd.f32 %v424, %v427
      %s429 = sld [smem:[#allocation3 + $0x24]]
      %v430 = vstv %s429
      %v431 = vmul.f32 %v219, %v430
      %v432 = vadd.f32 %v428, %v431
      %s433 = sld [smem:[#allocation3 + $0x34]]
      %v434 = vstv %s433
      %v435 = vadd.f32 %v432, %v434
      %v436 = vmul.f32 %v435, 0.5
      %v437 = vmul.f32 %v435, 0.70710677
      %v438 = vmul.f32 %v437, %v437
      %v439 = vmin.f32 16.0, %v438
      %v440 = vmul.f32 %v439, 2.1237322e-06
      %v441 = vadd.f32 %v440, 0.00028619796
      %v442 = vmul.f32 %v439, %v441
      %v443 = vadd.f32 %v442, 0.0036580483
      %v444 = vmul.f32 %v439, %v443
      %v445 = vadd.f32 %v444, 0.05243302
      %v446 = vmul.f32 %v439, %v445
      %v447 = vadd.f32 %v446, 0.18741608
      %v448 = vmul.f32 %v439, %v447
      %v449 = vadd.f32 %v448, 1.1283791
      %v450 = vmul.f32 %v437, %v449
      %v451 = vmul.f32 %v439, 3.8918573e-05
      %v452 = vadd.f32 %v451, 0.001143296
      %v453 = vmul.f32 %v439, %v452
      %v454 = vadd.f32 %v453, 0.014752088
      %v455 = vmul.f32 %v439, %v454
      %v456 = vadd.f32 %v455, 0.112945676
      %v457 = vmul.f32 %v439, %v456
      %v458 = vadd.f32 %v457, 0.4994258
      %v459 = vmul.f32 %v439, %v458
      %v460 = vadd.f32 %v459, 1.0
      %v461 = vrcp.pop %v460
      %v462 = vmul.f32 %v460, %v461
      %v463 = vsub.f32 1.0, %v462
      %v464 = vmul.f32 %v461, %v463
      %v465 = vadd.f32 %v461, %v464
      %vm466 = vweird.f32 %v460
      %vm467 = vweird.f32 %v461
      %vm468 = vmor %vm466, %vm467
      %v469 = vsel %vm468, %v461, %v465
      %v470 = vand.u32 2147483647, %v460
      %vm471 = vcmp.eq.f32.partialorder %v470, 8.507059e+37
      %v472 = vand.u32 %v460, 2147483648
      %v473 = vor.u32 1.1754944e-38, %v472
      %v474 = vsel %vm471, %v473, %v469
      %v475 = vmul.f32 %v450, %v474
      %v476 = vmin.f32 %v475, 1.0
      %v477 = vmax.f32 %v476, -1.0
      %v478 = vadd.f32 %v477, 1.0
      %v479 = vmul.f32 %v436, %v478
      %s480 = sld [smem:[#allocation3 + $0x47]]
      %v481 = vstv %s480
      %v482 = vmul.f32 %v481, %v479
      %v483 = vadd.f32 %v417, %v482
      %s484 = sld [smem:[#allocation3 + $0x48]]
      %v485 = vstv %s484
      %v486 = vmul.f32 %v485, %v479
      %v487 = vadd.f32 %v421, %v486
      %s488 = sld [smem:[#allocation3 + $0x5]]
      %v489 = vstv %s488
      %v490 = vmul.f32 %v215, %v489
      %s491 = sld [smem:[#allocation3 + $0x15]]
      %v492 = vstv %s491
      %v493 = vmul.f32 %v217, %v492
      %v494 = vadd.f32 %v490, %v493
      %s495 = sld [smem:[#allocation3 + $0x25]]
      %v496 = vstv %s495
      %v497 = vmul.f32 %v219, %v496
      %v498 = vadd.f32 %v494, %v497
      %s499 = sld [smem:[#allocation3 + $0x35]]
      %v500 = vstv %s499
      %v501 = vadd.f32 %v498, %v500
      %v502 = vmul.f32 %v501, 0.5
      %v503 = vmul.f32 %v501, 0.70710677
      %v504 = vmul.f32 %v503, %v503
      %v505 = vmin.f32 16.0, %v504
      %v506 = vmul.f32 %v505, 2.1237322e-06
      %v507 = vadd.f32 %v506, 0.00028619796
      %v508 = vmul.f32 %v505, %v507
      %v509 = vadd.f32 %v508, 0.0036580483
      %v510 = vmul.f32 %v505, %v509
      %v511 = vadd.f32 %v510, 0.05243302
      %v512 = vmul.f32 %v505, %v511
      %v513 = vadd.f32 %v512, 0.18741608
      %v514 = vmul.f32 %v505, %v513
      %v515 = vadd.f32 %v514, 1.1283791
      %v516 = vmul.f32 %v503, %v515
      %v517 = vmul.f32 %v505, 3.8918573e-05
      %v518 = vadd.f32 %v517, 0.001143296
      %v519 = vmul.f32 %v505, %v518
      %v520 = vadd.f32 %v519, 0.014752088
      %v521 = vmul.f32 %v505, %v520
      %v522 = vadd.f32 %v521, 0.112945676
      %v523 = vmul.f32 %v505, %v522
      %v524 = vadd.f32 %v523, 0.4994258
      %v525 = vmul.f32 %v505, %v524
      %v526 = vadd.f32 %v525, 1.0
      %v527 = vrcp.pop %v526
      %v528 = vmul.f32 %v526, %v527
      %v529 = vsub.f32 1.0, %v528
      %v530 = vmul.f32 %v527, %v529
      %v531 = vadd.f32 %v527, %v530
      %vm532 = vweird.f32 %v526
      %vm533 = vweird.f32 %v527
      %vm534 = vmor %vm532, %vm533
      %v535 = vsel %vm534, %v527, %v531
      %v536 = vand.u32 2147483647, %v526
      %vm537 = vcmp.eq.f32.partialorder %v536, 8.507059e+37
      %v538 = vand.u32 %v526, 2147483648
      %v539 = vor.u32 1.1754944e-38, %v538
      %v540 = vsel %vm537, %v539, %v535
      %v541 = vmul.f32 %v516, %v540
      %v542 = vmin.f32 %v541, 1.0
      %v543 = vmax.f32 %v542, -1.0
      %v544 = vadd.f32 %v543, 1.0
      %v545 = vmul.f32 %v502, %v544
      %s546 = sld [smem:[#allocation3 + $0x49]]
      %v547 = vstv %s546
      %v548 = vmul.f32 %v547, %v545
      %v549 = vadd.f32 %v483, %v548
      %s550 = sld [smem:[#allocation3 + $0x4a]]
      %v551 = vstv %s550
      %v552 = vmul.f32 %v551, %v545
      %v553 = vadd.f32 %v487, %v552
      %s554 = sld [smem:[#allocation3 + $0x6]]
      %v555 = vstv %s554
      %v556 = vmul.f32 %v215, %v555
      %s557 = sld [smem:[#allocation3 + $0x16]]
      %v558 = vstv %s557
      %v559 = vmul.f32 %v217, %v558
      %v560 = vadd.f32 %v556, %v559
      %s561 = sld [smem:[#allocation3 + $0x26]]
      %v562 = vstv %s561
      %v563 = vmul.f32 %v219, %v562
      %v564 = vadd.f32 %v560, %v563
      %s565 = sld [smem:[#allocation3 + $0x36]]
      %v566 = vstv %s565
      %v567 = vadd.f32 %v564, %v566
      %v568 = vmul.f32 %v567, 0.5
      %v569 = vmul.f32 %v567, 0.70710677
      %v570 = vmul.f32 %v569, %v569
      %v571 = vmin.f32 16.0, %v570
      %v572 = vmul.f32 %v571, 2.1237322e-06
      %v573 = vadd.f32 %v572, 0.00028619796
      %v574 = vmul.f32 %v571, %v573
      %v575 = vadd.f32 %v574, 0.0036580483
      %v576 = vmul.f32 %v571, %v575
      %v577 = vadd.f32 %v576, 0.05243302
      %v578 = vmul.f32 %v571, %v577
      %v579 = vadd.f32 %v578, 0.18741608
      %v580 = vmul.f32 %v571, %v579
      %v581 = vadd.f32 %v580, 1.1283791
      %v582 = vmul.f32 %v569, %v581
      %v583 = vmul.f32 %v571, 3.8918573e-05
      %v584 = vadd.f32 %v583, 0.001143296
      %v585 = vmul.f32 %v571, %v584
      %v586 = vadd.f32 %v585, 0.014752088
      %v587 = vmul.f32 %v571, %v586
      %v588 = vadd.f32 %v587, 0.112945676
      %v589 = vmul.f32 %v571, %v588
      %v590 = vadd.f32 %v589, 0.4994258
      %v591 = vmul.f32 %v571, %v590
      %v592 = vadd.f32 %v591, 1.0
      %v593 = vrcp.pop %v592
      %v594 = vmul.f32 %v592, %v593
      %v595 = vsub.f32 1.0, %v594
      %v596 = vmul.f32 %v593, %v595
      %v597 = vadd.f32 %v593, %v596
      %vm598 = vweird.f32 %v592
      %vm599 = vweird.f32 %v593
      %vm600 = vmor %vm598, %vm599
      %v601 = vsel %vm600, %v593, %v597
      %v602 = vand.u32 2147483647, %v592
      %vm603 = vcmp.eq.f32.partialorder %v602, 8.507059e+37
      %v604 = vand.u32 %v592, 2147483648
      %v605 = vor.u32 1.1754944e-38, %v604
      %v606 = vsel %vm603, %v605, %v601
      %v607 = vmul.f32 %v582, %v606
      %v608 = vmin.f32 %v607, 1.0
      %v609 = vmax.f32 %v608, -1.0
      %v610 = vadd.f32 %v609, 1.0
      %v611 = vmul.f32 %v568, %v610
      %s612 = sld [smem:[#allocation3 + $0x4b]]
      %v613 = vstv %s612
      %v614 = vmul.f32 %v613, %v611
      %v615 = vadd.f32 %v549, %v614
      %s616 = sld [smem:[#allocation3 + $0x4c]]
      %v617 = vstv %s616
      %v618 = vmul.f32 %v617, %v611
      %v619 = vadd.f32 %v553, %v618
      %s620 = sld [smem:[#allocation3 + $0x7]]
      %v621 = vstv %s620
      %v622 = vmul.f32 %v215, %v621
      %s623 = sld [smem:[#allocation3 + $0x17]]
      %v624 = vstv %s623
      %v625 = vmul.f32 %v217, %v624
      %v626 = vadd.f32 %v622, %v625
      %s627 = sld [smem:[#allocation3 + $0x27]]
      %v628 = vstv %s627
      %v629 = vmul.f32 %v219, %v628
      %v630 = vadd.f32 %v626, %v629
      %s631 = sld [smem:[#allocation3 + $0x37]]
      %v632 = vstv %s631
      %v633 = vadd.f32 %v630, %v632
      %v634 = vmul.f32 %v633, 0.5
      %v635 = vmul.f32 %v633, 0.70710677
      %v636 = vmul.f32 %v635, %v635
      %v637 = vmin.f32 16.0, %v636
      %v638 = vmul.f32 %v637, 2.1237322e-06
      %v639 = vadd.f32 %v638, 0.00028619796
      %v640 = vmul.f32 %v637, %v639
      %v641 = vadd.f32 %v640, 0.0036580483
      %v642 = vmul.f32 %v637, %v641
      %v643 = vadd.f32 %v642, 0.05243302
      %v644 = vmul.f32 %v637, %v643
      %v645 = vadd.f32 %v644, 0.18741608
      %v646 = vmul.f32 %v637, %v645
      %v647 = vadd.f32 %v646, 1.1283791
      %v648 = vmul.f32 %v635, %v647
      %v649 = vmul.f32 %v637, 3.8918573e-05
      %v650 = vadd.f32 %v649, 0.001143296
      %v651 = vmul.f32 %v637, %v650
      %v652 = vadd.f32 %v651, 0.014752088
      %v653 = vmul.f32 %v637, %v652
      %v654 = vadd.f32 %v653, 0.112945676
      %v655 = vmul.f32 %v637, %v654
      %v656 = vadd.f32 %v655, 0.4994258
      %v657 = vmul.f32 %v637, %v656
      %v658 = vadd.f32 %v657, 1.0
      %v659 = vrcp.pop %v658
      %v660 = vmul.f32 %v658, %v659
      %v661 = vsub.f32 1.0, %v660
      %v662 = vmul.f32 %v659, %v661
      %v663 = vadd.f32 %v659, %v662
      %vm664 = vweird.f32 %v658
      %vm665 = vweird.f32 %v659
      %vm666 = vmor %vm664, %vm665
      %v667 = vsel %vm666, %v659, %v663
      %v668 = vand.u32 2147483647, %v658
      %vm669 = vcmp.eq.f32.partialorder %v668, 8.507059e+37
      %v670 = vand.u32 %v658, 2147483648
      %v671 = vor.u32 1.1754944e-38, %v670
      %v672 = vsel %vm669, %v671, %v667
      %v673 = vmul.f32 %v648, %v672
      %v674 = vmin.f32 %v673, 1.0
      %v675 = vmax.f32 %v674, -1.0
      %v676 = vadd.f32 %v675, 1.0
      %v677 = vmul.f32 %v634, %v676
      %s678 = sld [smem:[#allocation3 + $0x4d]]
      %v679 = vstv %s678
      %v680 = vmul.f32 %v679, %v677
      %v681 = vadd.f32 %v615, %v680
      %s682 = sld [smem:[#allocation3 + $0x4e]]
      %v683 = vstv %s682
      %v684 = vmul.f32 %v683, %v677
      %v685 = vadd.f32 %v619, %v684
      %s686 = sld [smem:[#allocation3 + $0x8]]
      %v687 = vstv %s686
      %v688 = vmul.f32 %v215, %v687
      %s689 = sld [smem:[#allocation3 + $0x18]]
      %v690 = vstv %s689
      %v691 = vmul.f32 %v217, %v690
      %v692 = vadd.f32 %v688, %v691
      %s693 = sld [smem:[#allocation3 + $0x28]]
      %v694 = vstv %s693
      %v695 = vmul.f32 %v219, %v694
      %v696 = vadd.f32 %v692, %v695
      %s697 = sld [smem:[#allocation3 + $0x38]]
      %v698 = vstv %s697
      %v699 = vadd.f32 %v696, %v698
      %v700 = vmul.f32 %v699, 0.5
      %v701 = vmul.f32 %v699, 0.70710677
      %v702 = vmul.f32 %v701, %v701
      %v703 = vmin.f32 16.0, %v702
      %v704 = vmul.f32 %v703, 2.1237322e-06
      %v705 = vadd.f32 %v704, 0.00028619796
      %v706 = vmul.f32 %v703, %v705
      %v707 = vadd.f32 %v706, 0.0036580483
      %v708 = vmul.f32 %v703, %v707
      %v709 = vadd.f32 %v708, 0.05243302
      %v710 = vmul.f32 %v703, %v709
      %v711 = vadd.f32 %v710, 0.18741608
      %v712 = vmul.f32 %v703, %v711
      %v713 = vadd.f32 %v712, 1.1283791
      %v714 = vmul.f32 %v701, %v713
      %v715 = vmul.f32 %v703, 3.8918573e-05
      %v716 = vadd.f32 %v715, 0.001143296
      %v717 = vmul.f32 %v703, %v716
      %v718 = vadd.f32 %v717, 0.014752088
      %v719 = vmul.f32 %v703, %v718
      %v720 = vadd.f32 %v719, 0.112945676
      %v721 = vmul.f32 %v703, %v720
      %v722 = vadd.f32 %v721, 0.4994258
      %v723 = vmul.f32 %v703, %v722
      %v724 = vadd.f32 %v723, 1.0
      %v725 = vrcp.pop %v724
      %v726 = vmul.f32 %v724, %v725
      %v727 = vsub.f32 1.0, %v726
      %v728 = vmul.f32 %v725, %v727
      %v729 = vadd.f32 %v725, %v728
      %vm730 = vweird.f32 %v724
      %vm731 = vweird.f32 %v725
      %vm732 = vmor %vm730, %vm731
      %v733 = vsel %vm732, %v725, %v729
      %v734 = vand.u32 2147483647, %v724
      %vm735 = vcmp.eq.f32.partialorder %v734, 8.507059e+37
      %v736 = vand.u32 %v724, 2147483648
      %v737 = vor.u32 1.1754944e-38, %v736
      %v738 = vsel %vm735, %v737, %v733
      %v739 = vmul.f32 %v714, %v738
      %v740 = vmin.f32 %v739, 1.0
      %v741 = vmax.f32 %v740, -1.0
      %v742 = vadd.f32 %v741, 1.0
      %v743 = vmul.f32 %v700, %v742
      %s744 = sld [smem:[#allocation3 + $0x4f]]
      %v745 = vstv %s744
      %v746 = vmul.f32 %v745, %v743
      %v747 = vadd.f32 %v681, %v746
      %s748 = sld [smem:[#allocation3 + $0x50]]
      %v749 = vstv %s748
      %v750 = vmul.f32 %v749, %v743
      %v751 = vadd.f32 %v685, %v750
      %s752 = sld [smem:[#allocation3 + $0x9]]
      %v753 = vstv %s752
      %v754 = vmul.f32 %v215, %v753
      %s755 = sld [smem:[#allocation3 + $0x19]]
      %v756 = vstv %s755
      %v757 = vmul.f32 %v217, %v756
      %v758 = vadd.f32 %v754, %v757
      %s759 = sld [smem:[#allocation3 + $0x29]]
      %v760 = vstv %s759
      %v761 = vmul.f32 %v219, %v760
      %v762 = vadd.f32 %v758, %v761
      %s763 = sld [smem:[#allocation3 + $0x39]]
      %v764 = vstv %s763
      %v765 = vadd.f32 %v762, %v764
      %v766 = vmul.f32 %v765, 0.5
      %v767 = vmul.f32 %v765, 0.70710677
      %v768 = vmul.f32 %v767, %v767
      %v769 = vmin.f32 16.0, %v768
      %v770 = vmul.f32 %v769, 2.1237322e-06
      %v771 = vadd.f32 %v770, 0.00028619796
      %v772 = vmul.f32 %v769, %v771
      %v773 = vadd.f32 %v772, 0.0036580483
      %v774 = vmul.f32 %v769, %v773
      %v775 = vadd.f32 %v774, 0.05243302
      %v776 = vmul.f32 %v769, %v775
      %v777 = vadd.f32 %v776, 0.18741608
      %v778 = vmul.f32 %v769, %v777
      %v779 = vadd.f32 %v778, 1.1283791
      %v780 = vmul.f32 %v767, %v779
      %v781 = vmul.f32 %v769, 3.8918573e-05
      %v782 = vadd.f32 %v781, 0.001143296
      %v783 = vmul.f32 %v769, %v782
      %v784 = vadd.f32 %v783, 0.014752088
      %v785 = vmul.f32 %v769, %v784
      %v786 = vadd.f32 %v785, 0.112945676
      %v787 = vmul.f32 %v769, %v786
      %v788 = vadd.f32 %v787, 0.4994258
      %v789 = vmul.f32 %v769, %v788
      %v790 = vadd.f32 %v789, 1.0
      %v791 = vrcp.pop %v790
      %v792 = vmul.f32 %v790, %v791
      %v793 = vsub.f32 1.0, %v792
      %v794 = vmul.f32 %v791, %v793
      %v795 = vadd.f32 %v791, %v794
      %vm796 = vweird.f32 %v790
      %vm797 = vweird.f32 %v791
      %vm798 = vmor %vm796, %vm797
      %v799 = vsel %vm798, %v791, %v795
      %v800 = vand.u32 2147483647, %v790
      %vm801 = vcmp.eq.f32.partialorder %v800, 8.507059e+37
      %v802 = vand.u32 %v790, 2147483648
      %v803 = vor.u32 1.1754944e-38, %v802
      %v804 = vsel %vm801, %v803, %v799
      %v805 = vmul.f32 %v780, %v804
      %v806 = vmin.f32 %v805, 1.0
      %v807 = vmax.f32 %v806, -1.0
      %v808 = vadd.f32 %v807, 1.0
      %v809 = vmul.f32 %v766, %v808
      %s810 = sld [smem:[#allocation3 + $0x51]]
      %v811 = vstv %s810
      %v812 = vmul.f32 %v811, %v809
      %v813 = vadd.f32 %v747, %v812
      %s814 = sld [smem:[#allocation3 + $0x52]]
      %v815 = vstv %s814
      %v816 = vmul.f32 %v815, %v809
      %v817 = vadd.f32 %v751, %v816
      %s818 = sld [smem:[#allocation3 + $0xa]]
      %v819 = vstv %s818
      %v820 = vmul.f32 %v215, %v819
      %s821 = sld [smem:[#allocation3 + $0x1a]]
      %v822 = vstv %s821
      %v823 = vmul.f32 %v217, %v822
      %v824 = vadd.f32 %v820, %v823
      %s825 = sld [smem:[#allocation3 + $0x2a]]
      %v826 = vstv %s825
      %v827 = vmul.f32 %v219, %v826
      %v828 = vadd.f32 %v824, %v827
      %s829 = sld [smem:[#allocation3 + $0x3a]]
      %v830 = vstv %s829
      %v831 = vadd.f32 %v828, %v830
      %v832 = vmul.f32 %v831, 0.5
      %v833 = vmul.f32 %v831, 0.70710677
      %v834 = vmul.f32 %v833, %v833
      %v835 = vmin.f32 16.0, %v834
      %v836 = vmul.f32 %v835, 2.1237322e-06
      %v837 = vadd.f32 %v836, 0.00028619796
      %v838 = vmul.f32 %v835, %v837
      %v839 = vadd.f32 %v838, 0.0036580483
      %v840 = vmul.f32 %v835, %v839
      %v841 = vadd.f32 %v840, 0.05243302
      %v842 = vmul.f32 %v835, %v841
      %v843 = vadd.f32 %v842, 0.18741608
      %v844 = vmul.f32 %v835, %v843
      %v845 = vadd.f32 %v844, 1.1283791
      %v846 = vmul.f32 %v833, %v845
      %v847 = vmul.f32 %v835, 3.8918573e-05
      %v848 = vadd.f32 %v847, 0.001143296
      %v849 = vmul.f32 %v835, %v848
      %v850 = vadd.f32 %v849, 0.014752088
      %v851 = vmul.f32 %v835, %v850
      %v852 = vadd.f32 %v851, 0.112945676
      %v853 = vmul.f32 %v835, %v852
      %v854 = vadd.f32 %v853, 0.4994258
      %v855 = vmul.f32 %v835, %v854
      %v856 = vadd.f32 %v855, 1.0
      %v857 = vrcp.pop %v856
      %v858 = vmul.f32 %v856, %v857
      %v859 = vsub.f32 1.0, %v858
      %v860 = vmul.f32 %v857, %v859
      %v861 = vadd.f32 %v857, %v860
      %vm862 = vweird.f32 %v856
      %vm863 = vweird.f32 %v857
      %vm864 = vmor %vm862, %vm863
      %v865 = vsel %vm864, %v857, %v861
      %v866 = vand.u32 2147483647, %v856
      %vm867 = vcmp.eq.f32.partialorder %v866, 8.507059e+37
      %v868 = vand.u32 %v856, 2147483648
      %v869 = vor.u32 1.1754944e-38, %v868
      %v870 = vsel %vm867, %v869, %v865
      %v871 = vmul.f32 %v846, %v870
      %v872 = vmin.f32 %v871, 1.0
      %v873 = vmax.f32 %v872, -1.0
      %v874 = vadd.f32 %v873, 1.0
      %v875 = vmul.f32 %v832, %v874
      %s876 = sld [smem:[#allocation3 + $0x53]]
      %v877 = vstv %s876
      %v878 = vmul.f32 %v877, %v875
      %v879 = vadd.f32 %v813, %v878
      %s880 = sld [smem:[#allocation3 + $0x54]]
      %v881 = vstv %s880
      %v882 = vmul.f32 %v881, %v875
      %v883 = vadd.f32 %v817, %v882
      %s884 = sld [smem:[#allocation3 + $0xb]]
      %v885 = vstv %s884
      %v886 = vmul.f32 %v215, %v885
      %s887 = sld [smem:[#allocation3 + $0x1b]]
      %v888 = vstv %s887
      %v889 = vmul.f32 %v217, %v888
      %v890 = vadd.f32 %v886, %v889
      %s891 = sld [smem:[#allocation3 + $0x2b]]
      %v892 = vstv %s891
      %v893 = vmul.f32 %v219, %v892
      %v894 = vadd.f32 %v890, %v893
      %s895 = sld [smem:[#allocation3 + $0x3b]]
      %v896 = vstv %s895
      %v897 = vadd.f32 %v894, %v896
      %v898 = vmul.f32 %v897, 0.5
      %v899 = vmul.f32 %v897, 0.70710677
      %v900 = vmul.f32 %v899, %v899
      %v901 = vmin.f32 16.0, %v900
      %v902 = vmul.f32 %v901, 2.1237322e-06
      %v903 = vadd.f32 %v902, 0.00028619796
      %v904 = vmul.f32 %v901, %v903
      %v905 = vadd.f32 %v904, 0.0036580483
      %v906 = vmul.f32 %v901, %v905
      %v907 = vadd.f32 %v906, 0.05243302
      %v908 = vmul.f32 %v901, %v907
      %v909 = vadd.f32 %v908, 0.18741608
      %v910 = vmul.f32 %v901, %v909
      %v911 = vadd.f32 %v910, 1.1283791
      %v912 = vmul.f32 %v899, %v911
      %v913 = vmul.f32 %v901, 3.8918573e-05
      %v914 = vadd.f32 %v913, 0.001143296
      %v915 = vmul.f32 %v901, %v914
      %v916 = vadd.f32 %v915, 0.014752088
      %v917 = vmul.f32 %v901, %v916
      %v918 = vadd.f32 %v917, 0.112945676
      %v919 = vmul.f32 %v901, %v918
      %v920 = vadd.f32 %v919, 0.4994258
      %v921 = vmul.f32 %v901, %v920
      %v922 = vadd.f32 %v921, 1.0
      %v923 = vrcp.pop %v922
      %v924 = vmul.f32 %v922, %v923
      %v925 = vsub.f32 1.0, %v924
      %v926 = vmul.f32 %v923, %v925
      %v927 = vadd.f32 %v923, %v926
      %vm928 = vweird.f32 %v922
      %vm929 = vweird.f32 %v923
      %vm930 = vmor %vm928, %vm929
      %v931 = vsel %vm930, %v923, %v927
      %v932 = vand.u32 2147483647, %v922
      %vm933 = vcmp.eq.f32.partialorder %v932, 8.507059e+37
      %v934 = vand.u32 %v922, 2147483648
      %v935 = vor.u32 1.1754944e-38, %v934
      %v936 = vsel %vm933, %v935, %v931
      %v937 = vmul.f32 %v912, %v936
      %v938 = vmin.f32 %v937, 1.0
      %v939 = vmax.f32 %v938, -1.0
      %v940 = vadd.f32 %v939, 1.0
      %v941 = vmul.f32 %v898, %v940
      %s942 = sld [smem:[#allocation3 + $0x55]]
      %v943 = vstv %s942
      %v944 = vmul.f32 %v943, %v941
      %v945 = vadd.f32 %v879, %v944
      %s946 = sld [smem:[#allocation3 + $0x56]]
      %v947 = vstv %s946
      %v948 = vmul.f32 %v947, %v941
      %v949 = vadd.f32 %v883, %v948
      %s950 = sld [smem:[#allocation3 + $0xc]]
      %v951 = vstv %s950
      %v952 = vmul.f32 %v215, %v951
      %s953 = sld [smem:[#allocation3 + $0x1c]]
      %v954 = vstv %s953
      %v955 = vmul.f32 %v217, %v954
      %v956 = vadd.f32 %v952, %v955
      %s957 = sld [smem:[#allocation3 + $0x2c]]
      %v958 = vstv %s957
      %v959 = vmul.f32 %v219, %v958
      %v960 = vadd.f32 %v956, %v959
      %s961 = sld [smem:[#allocation3 + $0x3c]]
      %v962 = vstv %s961
      %v963 = vadd.f32 %v960, %v962
      %v964 = vmul.f32 %v963, 0.5
      %v965 = vmul.f32 %v963, 0.70710677
      %v966 = vmul.f32 %v965, %v965
      %v967 = vmin.f32 16.0, %v966
      %v968 = vmul.f32 %v967, 2.1237322e-06
      %v969 = vadd.f32 %v968, 0.00028619796
      %v970 = vmul.f32 %v967, %v969
      %v971 = vadd.f32 %v970, 0.0036580483
      %v972 = vmul.f32 %v967, %v971
      %v973 = vadd.f32 %v972, 0.05243302
      %v974 = vmul.f32 %v967, %v973
      %v975 = vadd.f32 %v974, 0.18741608
      %v976 = vmul.f32 %v967, %v975
      %v977 = vadd.f32 %v976, 1.1283791
      %v978 = vmul.f32 %v965, %v977
      %v979 = vmul.f32 %v967, 3.8918573e-05
      %v980 = vadd.f32 %v979, 0.001143296
      %v981 = vmul.f32 %v967, %v980
      %v982 = vadd.f32 %v981, 0.014752088
      %v983 = vmul.f32 %v967, %v982
      %v984 = vadd.f32 %v983, 0.112945676
      %v985 = vmul.f32 %v967, %v984
      %v986 = vadd.f32 %v985, 0.4994258
      %v987 = vmul.f32 %v967, %v986
      %v988 = vadd.f32 %v987, 1.0
      %v989 = vrcp.pop %v988
      %v990 = vmul.f32 %v988, %v989
      %v991 = vsub.f32 1.0, %v990
      %v992 = vmul.f32 %v989, %v991
      %v993 = vadd.f32 %v989, %v992
      %vm994 = vweird.f32 %v988
      %vm995 = vweird.f32 %v989
      %vm996 = vmor %vm994, %vm995
      %v997 = vsel %vm996, %v989, %v993
      %v998 = vand.u32 2147483647, %v988
      %vm999 = vcmp.eq.f32.partialorder %v998, 8.507059e+37
      %v1000 = vand.u32 %v988, 2147483648
      %v1001 = vor.u32 1.1754944e-38, %v1000
      %v1002 = vsel %vm999, %v1001, %v997
      %v1003 = vmul.f32 %v978, %v1002
      %v1004 = vmin.f32 %v1003, 1.0
      %v1005 = vmax.f32 %v1004, -1.0
      %v1006 = vadd.f32 %v1005, 1.0
      %v1007 = vmul.f32 %v964, %v1006
      %s1008 = sld [smem:[#allocation3 + $0x57]]
      %v1009 = vstv %s1008
      %v1010 = vmul.f32 %v1009, %v1007
      %v1011 = vadd.f32 %v945, %v1010
      %s1012 = sld [smem:[#allocation3 + $0x58]]
      %v1013 = vstv %s1012
      %v1014 = vmul.f32 %v1013, %v1007
      %v1015 = vadd.f32 %v949, %v1014
      %s1016 = sld [smem:[#allocation3 + $0xd]]
      %v1017 = vstv %s1016
      %v1018 = vmul.f32 %v215, %v1017
      %s1019 = sld [smem:[#allocation3 + $0x1d]]
      %v1020 = vstv %s1019
      %v1021 = vmul.f32 %v217, %v1020
      %v1022 = vadd.f32 %v1018, %v1021
      %s1023 = sld [smem:[#allocation3 + $0x2d]]
      %v1024 = vstv %s1023
      %v1025 = vmul.f32 %v219, %v1024
      %v1026 = vadd.f32 %v1022, %v1025
      %s1027 = sld [smem:[#allocation3 + $0x3d]]
      %v1028 = vstv %s1027
      %v1029 = vadd.f32 %v1026, %v1028
      %v1030 = vmul.f32 %v1029, 0.5
      %v1031 = vmul.f32 %v1029, 0.70710677
      %v1032 = vmul.f32 %v1031, %v1031
      %v1033 = vmin.f32 16.0, %v1032
      %v1034 = vmul.f32 %v1033, 2.1237322e-06
      %v1035 = vadd.f32 %v1034, 0.00028619796
      %v1036 = vmul.f32 %v1033, %v1035
      %v1037 = vadd.f32 %v1036, 0.0036580483
      %v1038 = vmul.f32 %v1033, %v1037
      %v1039 = vadd.f32 %v1038, 0.05243302
      %v1040 = vmul.f32 %v1033, %v1039
      %v1041 = vadd.f32 %v1040, 0.18741608
      %v1042 = vmul.f32 %v1033, %v1041
      %v1043 = vadd.f32 %v1042, 1.1283791
      %v1044 = vmul.f32 %v1031, %v1043
      %v1045 = vmul.f32 %v1033, 3.8918573e-05
      %v1046 = vadd.f32 %v1045, 0.001143296
      %v1047 = vmul.f32 %v1033, %v1046
      %v1048 = vadd.f32 %v1047, 0.014752088
      %v1049 = vmul.f32 %v1033, %v1048
      %v1050 = vadd.f32 %v1049, 0.112945676
      %v1051 = vmul.f32 %v1033, %v1050
      %v1052 = vadd.f32 %v1051, 0.4994258
      %v1053 = vmul.f32 %v1033, %v1052
      %v1054 = vadd.f32 %v1053, 1.0
      %v1055 = vrcp.pop %v1054
      %v1056 = vmul.f32 %v1054, %v1055
      %v1057 = vsub.f32 1.0, %v1056
      %v1058 = vmul.f32 %v1055, %v1057
      %v1059 = vadd.f32 %v1055, %v1058
      %vm1060 = vweird.f32 %v1054
      %vm1061 = vweird.f32 %v1055
      %vm1062 = vmor %vm1060, %vm1061
      %v1063 = vsel %vm1062, %v1055, %v1059
      %v1064 = vand.u32 2147483647, %v1054
      %vm1065 = vcmp.eq.f32.partialorder %v1064, 8.507059e+37
      %v1066 = vand.u32 %v1054, 2147483648
      %v1067 = vor.u32 1.1754944e-38, %v1066
      %v1068 = vsel %vm1065, %v1067, %v1063
      %v1069 = vmul.f32 %v1044, %v1068
      %v1070 = vmin.f32 %v1069, 1.0
      %v1071 = vmax.f32 %v1070, -1.0
      %v1072 = vadd.f32 %v1071, 1.0
      %v1073 = vmul.f32 %v1030, %v1072
      %s1074 = sld [smem:[#allocation3 + $0x59]]
      %v1075 = vstv %s1074
      %v1076 = vmul.f32 %v1075, %v1073
      %v1077 = vadd.f32 %v1011, %v1076
      %s1078 = sld [smem:[#allocation3 + $0x5a]]
      %v1079 = vstv %s1078
      %v1080 = vmul.f32 %v1079, %v1073
      %v1081 = vadd.f32 %v1015, %v1080
      %s1082 = sld [smem:[#allocation3 + $0xe]]
      %v1083 = vstv %s1082
      %v1084 = vmul.f32 %v215, %v1083
      %s1085 = sld [smem:[#allocation3 + $0x1e]]
      %v1086 = vstv %s1085
      %v1087 = vmul.f32 %v217, %v1086
      %v1088 = vadd.f32 %v1084, %v1087
      %s1089 = sld [smem:[#allocation3 + $0x2e]]
      %v1090 = vstv %s1089
      %v1091 = vmul.f32 %v219, %v1090
      %v1092 = vadd.f32 %v1088, %v1091
      %s1093 = sld [smem:[#allocation3 + $0x3e]]
      %v1094 = vstv %s1093
      %v1095 = vadd.f32 %v1092, %v1094
      %v1096 = vmul.f32 %v1095, 0.5
      %v1097 = vmul.f32 %v1095, 0.70710677
      %v1098 = vmul.f32 %v1097, %v1097
      %v1099 = vmin.f32 16.0, %v1098
      %v1100 = vmul.f32 %v1099, 2.1237322e-06
      %v1101 = vadd.f32 %v1100, 0.00028619796
      %v1102 = vmul.f32 %v1099, %v1101
      %v1103 = vadd.f32 %v1102, 0.0036580483
      %v1104 = vmul.f32 %v1099, %v1103
      %v1105 = vadd.f32 %v1104, 0.05243302
      %v1106 = vmul.f32 %v1099, %v1105
      %v1107 = vadd.f32 %v1106, 0.18741608
      %v1108 = vmul.f32 %v1099, %v1107
      %v1109 = vadd.f32 %v1108, 1.1283791
      %v1110 = vmul.f32 %v1097, %v1109
      %v1111 = vmul.f32 %v1099, 3.8918573e-05
      %v1112 = vadd.f32 %v1111, 0.001143296
      %v1113 = vmul.f32 %v1099, %v1112
      %v1114 = vadd.f32 %v1113, 0.014752088
      %v1115 = vmul.f32 %v1099, %v1114
      %v1116 = vadd.f32 %v1115, 0.112945676
      %v1117 = vmul.f32 %v1099, %v1116
      %v1118 = vadd.f32 %v1117, 0.4994258
      %v1119 = vmul.f32 %v1099, %v1118
      %v1120 = vadd.f32 %v1119, 1.0
      %v1121 = vrcp.pop %v1120
      %v1122 = vmul.f32 %v1120, %v1121
      %v1123 = vsub.f32 1.0, %v1122
      %v1124 = vmul.f32 %v1121, %v1123
      %v1125 = vadd.f32 %v1121, %v1124
      %vm1126 = vweird.f32 %v1120
      %vm1127 = vweird.f32 %v1121
      %vm1128 = vmor %vm1126, %vm1127
      %v1129 = vsel %vm1128, %v1121, %v1125
      %v1130 = vand.u32 2147483647, %v1120
      %vm1131 = vcmp.eq.f32.partialorder %v1130, 8.507059e+37
      %v1132 = vand.u32 %v1120, 2147483648
      %v1133 = vor.u32 1.1754944e-38, %v1132
      %v1134 = vsel %vm1131, %v1133, %v1129
      %v1135 = vmul.f32 %v1110, %v1134
      %v1136 = vmin.f32 %v1135, 1.0
      %v1137 = vmax.f32 %v1136, -1.0
      %v1138 = vadd.f32 %v1137, 1.0
      %v1139 = vmul.f32 %v1096, %v1138
      %s1140 = sld [smem:[#allocation3 + $0x5b]]
      %v1141 = vstv %s1140
      %v1142 = vmul.f32 %v1141, %v1139
      %v1143 = vadd.f32 %v1077, %v1142
      %s1144 = sld [smem:[#allocation3 + $0x5c]]
      %v1145 = vstv %s1144
      %v1146 = vmul.f32 %v1145, %v1139
      %v1147 = vadd.f32 %v1081, %v1146
      %s1148 = sld [smem:[#allocation3 + $0xf]]
      %v1149 = vstv %s1148
      %v1150 = vmul.f32 %v215, %v1149
      %s1151 = sld [smem:[#allocation3 + $0x1f]]
      %v1152 = vstv %s1151
      %v1153 = vmul.f32 %v217, %v1152
      %v1154 = vadd.f32 %v1150, %v1153
      %s1155 = sld [smem:[#allocation3 + $0x2f]]
      %v1156 = vstv %s1155
      %v1157 = vmul.f32 %v219, %v1156
      %v1158 = vadd.f32 %v1154, %v1157
      %s1159 = sld [smem:[#allocation3 + $0x3f]]
      %v1160 = vstv %s1159
      %v1161 = vadd.f32 %v1158, %v1160
      %v1162 = vmul.f32 %v1161, 0.5
      %v1163 = vmul.f32 %v1161, 0.70710677
      %v1164 = vmul.f32 %v1163, %v1163
      %v1165 = vmin.f32 16.0, %v1164
      %v1166 = vmul.f32 %v1165, 2.1237322e-06
      %v1167 = vadd.f32 %v1166, 0.00028619796
      %v1168 = vmul.f32 %v1165, %v1167
      %v1169 = vadd.f32 %v1168, 0.0036580483
      %v1170 = vmul.f32 %v1165, %v1169
      %v1171 = vadd.f32 %v1170, 0.05243302
      %v1172 = vmul.f32 %v1165, %v1171
      %v1173 = vadd.f32 %v1172, 0.18741608
      %v1174 = vmul.f32 %v1165, %v1173
      %v1175 = vadd.f32 %v1174, 1.1283791
      %v1176 = vmul.f32 %v1163, %v1175
      %v1177 = vmul.f32 %v1165, 3.8918573e-05
      %v1178 = vadd.f32 %v1177, 0.001143296
      %v1179 = vmul.f32 %v1165, %v1178
      %v1180 = vadd.f32 %v1179, 0.014752088
      %v1181 = vmul.f32 %v1165, %v1180
      %v1182 = vadd.f32 %v1181, 0.112945676
      %v1183 = vmul.f32 %v1165, %v1182
      %v1184 = vadd.f32 %v1183, 0.4994258
      %v1185 = vmul.f32 %v1165, %v1184
      %v1186 = vadd.f32 %v1185, 1.0
      %v1187 = vrcp.pop %v1186
      %v1188 = vmul.f32 %v1186, %v1187
      %v1189 = vsub.f32 1.0, %v1188
      %v1190 = vmul.f32 %v1187, %v1189
      %v1191 = vadd.f32 %v1187, %v1190
      %vm1192 = vweird.f32 %v1186
      %vm1193 = vweird.f32 %v1187
      %vm1194 = vmor %vm1192, %vm1193
      %v1195 = vsel %vm1194, %v1187, %v1191
      %v1196 = vand.u32 2147483647, %v1186
      %vm1197 = vcmp.eq.f32.partialorder %v1196, 8.507059e+37
      %v1198 = vand.u32 %v1186, 2147483648
      %v1199 = vor.u32 1.1754944e-38, %v1198
      %v1200 = vsel %vm1197, %v1199, %v1195
      %v1201 = vmul.f32 %v1176, %v1200
      %v1202 = vmin.f32 %v1201, 1.0
      %v1203 = vmax.f32 %v1202, -1.0
      %v1204 = vadd.f32 %v1203, 1.0
      %v1205 = vmul.f32 %v1162, %v1204
      %s1206 = sld [smem:[#allocation3 + $0x5d]]
      %v1207 = vstv %s1206
      %v1208 = vmul.f32 %v1207, %v1205
      %v1209 = vadd.f32 %v1143, %v1208
      %s1210 = sld [smem:[#allocation3 + $0x5e]]
      %v1211 = vstv %s1210
      %v1212 = vmul.f32 %v1211, %v1205
      %v1213 = vadd.f32 %v1147, %v1212
      %s1214 = sld [smem:[#allocation3 + $0x10]]
      %v1215 = vstv %s1214
      %v1216 = vmul.f32 %v215, %v1215
      %s1217 = sld [smem:[#allocation3 + $0x20]]
      %v1218 = vstv %s1217
      %v1219 = vmul.f32 %v217, %v1218
      %v1220 = vadd.f32 %v1216, %v1219
      %s1221 = sld [smem:[#allocation3 + $0x30]]
      %v1222 = vstv %s1221
      %v1223 = vmul.f32 %v219, %v1222
      %v1224 = vadd.f32 %v1220, %v1223
      %s1225 = sld [smem:[#allocation3 + $0x40]]
      %v1226 = vstv %s1225
      %v1227 = vadd.f32 %v1224, %v1226
      %v1228 = vmul.f32 %v1227, 0.5
      %v1229 = vmul.f32 %v1227, 0.70710677
      %v1230 = vmul.f32 %v1229, %v1229
      %v1231 = vmin.f32 16.0, %v1230
      %v1232 = vmul.f32 %v1231, 2.1237322e-06
      %v1233 = vadd.f32 %v1232, 0.00028619796
      %v1234 = vmul.f32 %v1231, %v1233
      %v1235 = vadd.f32 %v1234, 0.0036580483
      %v1236 = vmul.f32 %v1231, %v1235
      %v1237 = vadd.f32 %v1236, 0.05243302
      %v1238 = vmul.f32 %v1231, %v1237
      %v1239 = vadd.f32 %v1238, 0.18741608
      %v1240 = vmul.f32 %v1231, %v1239
      %v1241 = vadd.f32 %v1240, 1.1283791
      %v1242 = vmul.f32 %v1229, %v1241
      %v1243 = vmul.f32 %v1231, 3.8918573e-05
      %v1244 = vadd.f32 %v1243, 0.001143296
      %v1245 = vmul.f32 %v1231, %v1244
      %v1246 = vadd.f32 %v1245, 0.014752088
      %v1247 = vmul.f32 %v1231, %v1246
      %v1248 = vadd.f32 %v1247, 0.112945676
      %v1249 = vmul.f32 %v1231, %v1248
      %v1250 = vadd.f32 %v1249, 0.4994258
      %v1251 = vmul.f32 %v1231, %v1250
      %v1252 = vadd.f32 %v1251, 1.0
      %v1253 = vrcp.pop %v1252
      %v1254 = vmul.f32 %v1252, %v1253
      %v1255 = vsub.f32 1.0, %v1254
      %v1256 = vmul.f32 %v1253, %v1255
      %v1257 = vadd.f32 %v1253, %v1256
      %vm1258 = vweird.f32 %v1252
      %vm1259 = vweird.f32 %v1253
      %vm1260 = vmor %vm1258, %vm1259
      %v1261 = vsel %vm1260, %v1253, %v1257
      %v1262 = vand.u32 2147483647, %v1252
      %vm1263 = vcmp.eq.f32.partialorder %v1262, 8.507059e+37
      %v1264 = vand.u32 %v1252, 2147483648
      %v1265 = vor.u32 1.1754944e-38, %v1264
      %v1266 = vsel %vm1263, %v1265, %v1261
      %v1267 = vmul.f32 %v1242, %v1266
      %v1268 = vmin.f32 %v1267, 1.0
      %v1269 = vmax.f32 %v1268, -1.0
      %v1270 = vadd.f32 %v1269, 1.0
      %v1271 = vmul.f32 %v1228, %v1270
      %s1272 = sld [smem:[#allocation3 + $0x5f]]
      %v1273 = vstv %s1272
      %v1274 = vmul.f32 %v1273, %v1271
      %v1275 = vadd.f32 %v1209, %v1274
      %s1276 = sld [smem:[#allocation3 + $0x60]]
      %v1277 = vstv %s1276
      %v1278 = vmul.f32 %v1277, %v1271
      %v1279 = vadd.f32 %v1213, %v1278
      %s1280 = sld [smem:[#allocation3]]
      %v1281 = vld [vmem:[%s198] sm:$0x3]
      %v1282 = vstv %s1280
      %v1283 = vmul.f32 %v1282, %v1281
      %v1284 = vadd.f32 %v1283, %v1275
      %1285 = vst [vmem:[%s214] sm:$0x3] %v1284
      %s1286 = scalar_lea.vmem %s198, 2
      %v1287 = vld [vmem:[%s1286] sm:$0x3]
      %v1288 = vmul.f32 %v1282, %v1287
      %v1289 = vadd.f32 %v1288, %v1279
      %s1290 = scalar_lea.vmem %s214, 2
      %1291 = vst [vmem:[%s1290] sm:$0x3] %v1289
      %p1292 = scmp.lt.s32.totalorder %s26, 1
      %s1293 = scalar_select %p1292, %s26, 1
      %p1294 = scmp.lt.s32.totalorder %s27, 0
      %s1295 = scalar_select %p1294, %s27, 0
      %s1296 = smul.addr %s1293, 2
      %s1297 = sadd.s32 %s1295, %s1296
      %s1298 = smul.addr %s1297, 2
      %s1299 = scalar_lea.vmem %s3, %s1298
      // Predicated region
      $region29: #{refinement_forward.1} parent=27 // pred_check
        %p1300 = pneg %p110
      $region30: #{refinement_forward.1} parent=27 // pred_check_branch
        %1302 = sbr.rel (%p1300) target = $region32
      $region31: #{refinement_forward.1} parent=27 // pred_region
        _
      $region32: #{refinement_forward.1} parent=27 // pred_fallthru
        _
    $region28: #{refinement_forward.1} parent=5 // pred_fallthru
      _
    %p1303 = scmp.le.s32.totalorder 2, %s17
    // Predicated region
    $region33: #{refinement_forward.1} parent=5 // pred_check
      %p1304 = pneg %p1303
    $region34: #{refinement_forward.1} parent=5 // pred_check_branch
      %1306 = sbr.rel (%p1304) target = $region36
    $region35: #{refinement_forward.1} parent=5 // pred_region
      %s1307 = ssub.s32 %s17, 2
      // Predicated region
      $region37: #{refinement_forward.1} parent=35 // pred_check
        %p1308 = pneg %p116
      $region38: #{refinement_forward.1} parent=35 // pred_check_branch
        %1310 = sbr.rel (%p1308) target = $region40
      $region39: #{refinement_forward.1} parent=35 // pred_region
        %p1311 = scmp.lt.s32.totalorder %s28, 1
        %s1312 = scalar_select %p1311, %s28, 1
        %p1313 = scmp.lt.s32.totalorder %s29, 0
        %s1314 = scalar_select %p1313, %s29, 0
        %s1315 = smul.addr %s1312, 2
        %s1316 = sadd.s32 %s1314, %s1315
        %s1317 = smul.addr %s1316, 2
        %s1318 = scalar_lea.vmem %s3, %s1317
      $region40: #{refinement_forward.1} parent=35 // pred_fallthru
        _
    $region36: #{refinement_forward.1} parent=5 // pred_fallthru
      _
  $region6: #{refinement_forward.1} parent=0 // loop_footer
    %s21 = sadd.s32 1, %s17
  $region7: #{refinement_forward.1} parent=0 // loop_footer_branch
    %16 = sbr.rel target = $region3
  $region8: #{refinement_forward.1} parent=0 // loop_exit
    _

</llo_original>
